<compile_context>
chip_gen: v6e
topology: v6e:2x2x1
jax: 0.10.0
libtpu: 0.0.40
codegen_flags: <defaults>
</compile_context>

<pallas_src>
import numpy as np
import jax
import jax.numpy as jnp
from jax.experimental import pallas as pl
from jax.experimental.pallas import tpu as pltpu

_EPS = 1e-5                    # PyTorch LayerNorm default eps
_MXU_DTYPE = jnp.bfloat16      # MXU operand dtype (f32 accumulation everywhere)


# ----------------------------------------------------------------------------- kernel
def _refiner_kernel(inp_ref, v0_ref, i0_ref, wmat_hbm, vrow_hbm,     # inputs
                    pred_ref, vout_ref,                              # outputs
                    vstate, istate, wmat, vrow, dma_sem):            # scratch
    bb, n, d = vstate.shape
    n_pad = pred_ref.shape[-1]
    m = bb * n
    t = pl.program_id(1)
    mxu_dt = wmat.dtype
    f32 = jnp.float32

    # First step of each batch block: load carried state and DMA the two weight
    # slabs into single-buffered VMEM scratch (exactly one weight copy per block,
    # half the VMEM of a double-buffered BlockSpec input).
    @pl.when(t == 0)
    def _():
        vstate[...] = v0_ref[...]
        istate[...] = i0_ref[...]
        cw = pltpu.make_async_copy(wmat_hbm, wmat, dma_sem.at[0])
        cv = pltpu.make_async_copy(vrow_hbm, vrow, dma_sem.at[1])
        cw.start()
        cv.start()
        cw.wait()
        cv.wait()

    # ---- static views into the two packed weight slabs ----
    wg1 = wmat[0:3 * d, :]          # DeepSet layer-1 Gamma     (3D, D)
    wl1 = wmat[3 * d:6 * d, :]      # DeepSet layer-1 Lambda    (3D, D)
    wx = wmat[6 * d:7 * d, :]       # MLPAdjacency.proj_x       (D, D)
    wg2 = wmat[7 * d:8 * d, :]      # DeepSet layer-2 Gamma     (D, D)
    wl2 = wmat[8 * d:9 * d, :]      # DeepSet layer-2 Lambda    (D, D)

    gpre = vrow[0:1, :]             # norm_pre_n gamma          (1, 3D)
    bpre = vrow[1:2, :]             # norm_pre_n beta           (1, 3D)
    bx = vrow[2:3, :d]              # proj_x bias               (1, D)
    wi = vrow[3:4, :d]              # proj_i weight             (1, D)
    bi = vrow[4:5, :d]              # proj_i bias               (1, D)
    bg1 = vrow[5:6, :d]             # DeepSet layer-1 bias      (1, D)
    bg2 = vrow[6:7, :d]             # DeepSet layer-2 bias      (1, D)
    gn = vrow[7:8, :d]              # norm_n gamma              (1, D)
    bn = vrow[8:9, :d]              # norm_n beta               (1, D)
    ws = vrow[9:10, :d]             # proj_s weight (row)       (1, D)
    bs = vrow[10:11, 0:1]           # proj_s bias               (1, 1)

    nt3 = vstate[...]                            # (bb, n, d)  current node states
    it3 = istate[...]                            # (bb, n, n)  current incidence
    nt = nt3.reshape(m, d)                       # batch folded into M
    inp = inp_ref[...].reshape(m, d)

    # ---------------- MLPAdjacency (batch folded into the MXU M dim) ----------------
    x = jnp.dot(nt.astype(mxu_dt), wx, preferred_element_type=f32) + bx    # (m, d)
    x3 = x.reshape(bb, n, d)
    # s[b, e, m, :] = relu(x[b, m] + x[b, e] + i_t[b, e, m] * wi + bi)   (all f32/VPU)
    s = jnp.maximum(
        x3[:, None, :, :] + x3[:, :, None, :] + it3[..., None] * wi + bi, 0.0)
    logits = jnp.sum(s * ws, axis=-1) + bs                                 # (bb, n, n)
    # exp already sits on the EUP; the divide lowers to reciprocal+refine.  approx=True
    # was evaluated but rejected to keep the T-step recurrence within the reference
    # check tolerance (one-line change for production).
    it_new = 1.0 / (1.0 + jnp.exp(-logits))                                # sigmoid

    # ------- updates_n = einsum('ben,bed->bnd', i_t, n_t): per-batch 2-D dots -------
    upd = jnp.concatenate(
        [jax.lax.dot_general(it_new[b], nt3[b], (((0,), (0,)), ((), ())),
                             preferred_element_type=f32)
         for b in range(bb)], axis=0)                                      # (m, d)

    # ------- norm_pre_n( cat([inputs, n_t, updates_n], -1) ), one flat LayerNorm -----
    cat = jnp.concatenate([inp, nt, upd], axis=-1)                         # (m, 3d)
    mu = jnp.mean(cat, axis=-1, keepdims=True)
    var = jnp.mean((cat - mu) ** 2, axis=-1, keepdims=True)
    cat_n = (cat - mu) * jax.lax.rsqrt(var + _EPS) * gpre + bpre           # (m, 3d)

    # ------- DeepSet (PermEqui-mean, 2 layers); Gamma dots are single (m, K) dots ----
    mean1 = jnp.mean(cat_n.reshape(bb, n, 3 * d), axis=1)                  # (bb, 3d)
    g1 = jnp.dot(cat_n.astype(mxu_dt), wg1, preferred_element_type=f32) + bg1
    l1 = jnp.dot(mean1.astype(mxu_dt), wl1, preferred_element_type=f32)    # (bb, d)
    h3 = jnp.maximum(g1.reshape(bb, n, d) - l1[:, None, :], 0.0)           # (bb, n, d)
    h = h3.reshape(m, d)

    mean2 = jnp.mean(h3, axis=1)                                           # (bb, d)
    g2 = jnp.dot(h.astype(mxu_dt), wg2, preferred_element_type=f32) + bg2  # (m, d)
    l2 = jnp.dot(mean2.astype(mxu_dt), wl2, preferred_element_type=f32)    # (bb, d)
    mlp = (g2.reshape(bb, n, d) - l2[:, None, :]).reshape(m, d)

    # ---------------- residual + norm_n ----------------
    y = nt + mlp
    mu2 = jnp.mean(y, axis=-1, keepdims=True)
    var2 = jnp.mean((y - mu2) ** 2, axis=-1, keepdims=True)
    nt_new = (y - mu2) * jax.lax.rsqrt(var2 + _EPS) * gn + bn              # (m, d)

    # ---------------- carry state + emit outputs ----------------
    vstate[...] = nt_new.reshape(bb, n, d)
    istate[...] = it_new
    if n_pad > n:   # lane-dense per-step prediction store (un-padded in the wrapper)
        it_store = jnp.concatenate(
            [it_new, jnp.zeros((bb, n, n_pad - n), f32)], axis=-1)
    else:
        it_store = it_new
    pred_ref[0] = it_store

    @pl.when(t == pl.num_programs(1) - 1)        # final v_t only once, on the last step
    def _():
        vout_ref[...] = nt_new.reshape(bb, n, d)


# ----------------------------------------------------------------------------- wrapper
def iterative_refiner_forward(slabs, inputs_proj, v0, i0, num_steps, *,
                              batch_blocks=1, vmem_limit_mb=64):
    """Runs `num_steps` GraphRefiner iterations in one fused pallas_call.

    Returns (preds, v_t, i_t); preds[t] == i_t after step t (the module's pred_bp),
    and i_t == preds[-1].
    """
    wmat, vrow = slabs
    b, n, d = v0.shape
    assert b % batch_blocks == 0
    bb = b // batch_blocks
    n_pad = ((n + 127) // 128) * 128       # lane-dense prediction slab width

    # NOTE: the VMEM state carry relies on T being the *minor*, "arbitrary" grid axis
    # so t runs 0..T-1 consecutively within each batch block.  Do not reorder the grid
    # or mark the step axis "parallel".
    grid = (batch_blocks, num_steps)
    in_specs = [
        pl.BlockSpec((bb, n, d), lambda bi, ti: (bi, 0, 0)),     # inputs_proj
        pl.BlockSpec((bb, n, d), lambda bi, ti: (bi, 0, 0)),     # initial v_t
        pl.BlockSpec((bb, n, n), lambda bi, ti: (bi, 0, 0)),     # initial i_t
        pl.BlockSpec(memory_space=pl.ANY),    # packed matrix slab (manual copy @ t==0)
        pl.BlockSpec(memory_space=pl.ANY),    # packed vector slab (manual copy @ t==0)
    ]
    out_shape = (
        jax.ShapeDtypeStruct((num_steps, b, n, n_pad), jnp.float32),  # per-step preds
        jax.ShapeDtypeStruct((b, n, d), jnp.float32),                 # final v_t
    )
    out_specs = (
        pl.BlockSpec((1, bb, n, n_pad), lambda bi, ti: (ti, bi, 0, 0)),
        pl.BlockSpec((bb, n, d), lambda bi, ti: (bi, 0, 0)),
    )
    preds_pad, v_t = pl.pallas_call(
        _refiner_kernel,
        out_shape=out_shape,
        grid=grid,
        in_specs=in_specs,
        out_specs=out_specs,
        scratch_shapes=[
            pltpu.VMEM((bb, n, d), jnp.float32),     # carried v_t
            pltpu.VMEM((bb, n, n), jnp.float32),     # carried i_t
            pltpu.VMEM(wmat.shape, wmat.dtype),      # resident matrix slab (1x, not 2x)
            pltpu.VMEM(vrow.shape, vrow.dtype),      # resident vector slab
            pltpu.SemaphoreType.DMA((2,)),
        ],
        compiler_params=pltpu.CompilerParams(
            dimension_semantics=("parallel", "arbitrary"),
            # v6e: can be raised toward ~100 MiB to fatten bb; v7x: keep <= 64 MiB and
            # re-derive bb (state + slabs + N^2*D relu intermediate must fit).
            vmem_limit_bytes=vmem_limit_mb * 1024 * 1024),
    )(inputs_proj, v0, i0, wmat, vrow)

    preds = preds_pad[..., :n]             # un-pad the lane-dense prediction slab
    return preds, v_t, preds[num_steps - 1]


# ----------------------------------------------------------------------------- params
def _linear_params(key, fan_in, fan_out, bias=True):
    kw, kb = jax.random.split(key)
    bound = 1.0 / np.sqrt(fan_in)
    w = jax.random.uniform(kw, (fan_in, fan_out), jnp.float32, -bound, bound)
    b = (jax.random.uniform(kb, (1, fan_out), jnp.float32, -bound, bound)
         if bias else None)
    return w, b


def pack_weights(p, d):
    """Packs all refiner weights into two VMEM-friendly slabs (2 DMAs per block)."""
    wmat = jnp.concatenate(
        [p["wg1"], p["wl1"], p["wx"], p["wg2"], p["wl2"]],
        axis=0).astype(_MXU_DTYPE)                                   # (9D, D) bf16

    def row(v):                                    # pad a (1, k) row out to (1, 3D)
        return jnp.pad(v, ((0, 0), (0, 3 * d - v.shape[1])))

    vrow = jnp.concatenate(
        [p["gpre"], p["bpre"],
         row(p["bx"]), row(p["wi"]), row(p["bi"]),
         row(p["bg1"]), row(p["bg2"]),
         row(p["gn"]), row(p["bn"]),
         row(p["ws"]), row(p["bs"])], axis=0)                        # (11, 3D) f32
    return wmat, vrow


def init_params(key, d_in, d):
    ks = jax.random.split(key, 8)
    p = {}
    p["w_in"], p["b_in"] = _linear_params(ks[0], d_in, d)        # proj_inputs
    p["wx"], p["bx"] = _linear_params(ks[1], d, d)               # MLPAdjacency.proj_x
    p["wi"], p["bi"] = _linear_params(ks[2], 1, d)               # MLPAdjacency.proj_i
    ws, bs = _linear_params(ks[3], d, 1)                         # MLPAdjacency.proj_s
    p["ws"] = ws.T                                               # (1, D), lane-major row
    p["bs"] = bs                                                 # (1, 1)
    p["gpre"] = jnp.ones((1, 3 * d), jnp.float32)                # norm_pre_n
    p["bpre"] = jnp.zeros((1, 3 * d), jnp.float32)
    p["wg1"], p["bg1"] = _linear_params(ks[4], 3 * d, d)         # DeepSet layer 1
    p["wl1"], _ = _linear_params(ks[5], 3 * d, d, bias=False)
    p["wg2"], p["bg2"] = _linear_params(ks[6], d, d)             # DeepSet layer 2
    p["wl2"], _ = _linear_params(ks[7], d, d, bias=False)
    p["gn"] = jnp.ones((1, d), jnp.float32)                      # norm_n
    p["bn"] = jnp.zeros((1, d), jnp.float32)
    return p, pack_weights(p, d)


# ----------------------------------------------------------------------------- pure-JAX reference
def _layernorm(x, g, b):
    mu = jnp.mean(x, -1, keepdims=True)
    var = jnp.mean((x - mu) ** 2, -1, keepdims=True)
    return (x - mu) * jax.lax.rsqrt(var + _EPS) * g + b


def _mm(a, w):
    # Mirrors the kernel: bf16 MXU operands, f32 accumulation.
    return jnp.dot(a.astype(_MXU_DTYPE), w.astype(_MXU_DTYPE),
                   preferred_element_type=jnp.float32)


def _ref_step(p, inp, nt, it):
    x = _mm(nt, p["wx"]) + p["bx"]
    inc = it[..., None] * p["wi"] + p["bi"]
    s = jnp.maximum(x[:, None, :, :] + x[:, :, None, :] + inc, 0.0)
    it_new = 1.0 / (1.0 + jnp.exp(-(jnp.sum(s * p["ws"], -1) + p["bs"][0, 0])))
    upd = jnp.einsum("ben,bed->bnd", it_new, nt)          # f32, as in the kernel
    cat_n = _layernorm(jnp.concatenate([inp, nt, upd], -1), p["gpre"], p["bpre"])
    h = jnp.maximum(_mm(cat_n, p["wg1"]) + p["bg1"]
                    - _mm(jnp.mean(cat_n, 1, keepdims=True), p["wl1"]), 0.0)
    out = _mm(h, p["wg2"]) + p["bg2"] - _mm(jnp.mean(h, 1, keepdims=True), p["wl2"])
    nt_new = _layernorm(nt + out, p["gn"], p["bn"])
    return it_new, nt_new


# ----------------------------------------------------------------------------- main
if __name__ == "__main__":
    B, N, D_IN, D_HID, T = 2, 8, 4, 32, 3

    key = jax.random.PRNGKey(0)
    k_in, k_par = jax.random.split(key)
    inputs = jax.random.normal(k_in, (B, N, D_IN), jnp.float32)

    params, slabs = init_params(k_par, D_IN, D_HID)

    # ---- IterativeRefiner.get_initial (plain-JAX glue) ----
    v_t = inputs @ params["w_in"] + params["b_in"]
    i_t = jnp.zeros((B, N, N), jnp.float32)

    # ---- IterativeRefiner.forward (t_skip=0, t_bp=T), fully fused over T ----
    inputs_proj = inputs @ params["w_in"] + params["b_in"]      # proj_inputs (glue)
    # On v7x pass batch_blocks=2 so megacore shards the parallel batch axis.
    preds, v_t, i_t = iterative_refiner_forward(slabs, inputs_proj, v_t, i_t, T,
                                                batch_blocks=1)
    pred_bp = [preds[ti] for ti in range(T)]                    # list of per-step i_t
    jax.block_until_ready((pred_bp, v_t, i_t))

    # ---- sanity check against a pure-JAX reference (same bf16 MXU quantization) ----
    v_ref = inputs @ params["w_in"] + params["b_in"]
    i_ref = jnp.zeros((B, N, N), jnp.float32)
    preds_ref = []
    for _ in range(T):
        i_ref, v_ref = _ref_step(params, inputs_proj, v_ref, i_ref)
        preds_ref.append(i_ref)

    # Both paths quantize MXU operands to bf16 (f32 accumulate), so remaining
    # differences are accumulation-order / transcendental-lowering level, occasionally
    # amplified through a bf16 rounding boundary across the T-step recurrence.
    assert np.allclose(np.asarray(i_t), np.asarray(preds_ref[-1]), atol=2e-3, rtol=1e-2)
    assert np.allclose(np.asarray(v_t), np.asarray(v_ref), atol=5e-3, rtol=1e-2)
    for ti in range(T):
        assert np.allclose(np.asarray(pred_bp[ti]), np.asarray(preds_ref[ti]),
                           atol=2e-3, rtol=1e-2)

    print("KERNEL_OK")
</pallas_src>

<mosaic_0001>
module attributes {stable_mosaic.version = 11 : i64} {
  func.func @_refiner_kernel(%arg0: i32, %arg1: i32, %arg2: memref<2x8x32xf32, #tpu.memory_space<vmem>>, %arg3: memref<2x8x32xf32, #tpu.memory_space<vmem>>, %arg4: memref<2x8x8xf32, #tpu.memory_space<vmem>>, %arg5: memref<288x32xbf16, #tpu.memory_space<any>>, %arg6: memref<11x96xf32, #tpu.memory_space<any>>, %arg7: memref<1x2x8x128xf32, #tpu.memory_space<vmem>>, %arg8: memref<2x8x32xf32, #tpu.memory_space<vmem>>, %arg9: memref<2x8x32xf32, #tpu.memory_space<vmem>>, %arg10: memref<2x8x8xf32, #tpu.memory_space<vmem>>, %arg11: memref<288x32xbf16, #tpu.memory_space<vmem>>, %arg12: memref<11x96xf32, #tpu.memory_space<vmem>>, %arg13: memref<2x!tpu.dma_semaphore, #tpu.memory_space<semaphore_mem>>) attributes {dimension_semantics = [#tpu.dimension_semantics<parallel>, #tpu.dimension_semantics<arbitrary>], iteration_bounds = array<i64: 1, 3>, scalar_prefetch = 0 : i64, scratch_operands = 5 : i64, tpu.core_type = #tpu.core_type<tc>, window_params = [{transform_indices = @transform_0, window_bounds = array<i64: 2, 8, 32>}, {transform_indices = @transform_1, window_bounds = array<i64: 2, 8, 32>}, {transform_indices = @transform_2, window_bounds = array<i64: 2, 8, 8>}, {}, {}, {transform_indices = @transform_5, window_bounds = array<i64: 1, 2, 8, 128>}, {transform_indices = @transform_6, window_bounds = array<i64: 2, 8, 32>}]} {
    %c0_i32 = arith.constant 0 : i32
    %0 = arith.cmpi eq, %arg1, %c0_i32 : i32
    %1 = arith.extui %0 : i1 to i32
    %c0_i32_0 = arith.constant 0 : i32
    %2 = arith.cmpi ne, %1, %c0_i32_0 : i32
    scf.if %2 {
      %c0_65 = arith.constant 0 : index
      %c0_66 = arith.constant 0 : index
      %c0_67 = arith.constant 0 : index
      %158 = vector.load %arg3[%c0_65, %c0_66, %c0_67] : memref<2x8x32xf32, #tpu.memory_space<vmem>>, vector<2x8x32xf32>
      %c0_68 = arith.constant 0 : index
      %c0_69 = arith.constant 0 : index
      %c0_70 = arith.constant 0 : index
      %159 = vector.load %arg9[%c0_68, %c0_69, %c0_70] : memref<2x8x32xf32, #tpu.memory_space<vmem>>, vector<2x8x32xf32>
      tpu.vector_store %arg9[%c0_68, %c0_69, %c0_70], %158 {strides = array<i32>} : memref<2x8x32xf32, #tpu.memory_space<vmem>>, vector<2x8x32xf32>,
      %c0_71 = arith.constant 0 : index
      %c0_72 = arith.constant 0 : index
      %c0_73 = arith.constant 0 : index
      %160 = vector.load %arg4[%c0_71, %c0_72, %c0_73] : memref<2x8x8xf32, #tpu.memory_space<vmem>>, vector<2x8x8xf32>
      %c0_74 = arith.constant 0 : index
      %c0_75 = arith.constant 0 : index
      %c0_76 = arith.constant 0 : index
      %161 = vector.load %arg10[%c0_74, %c0_75, %c0_76] : memref<2x8x8xf32, #tpu.memory_space<vmem>>, vector<2x8x8xf32>
      tpu.vector_store %arg10[%c0_74, %c0_75, %c0_76], %160 {strides = array<i32>} : memref<2x8x8xf32, #tpu.memory_space<vmem>>, vector<2x8x8xf32>,
      %c0_i32_77 = arith.constant 0 : i32
      %162 = tpu.memref_slice %arg13[%c0_i32_77] : memref<2x!tpu.dma_semaphore, #tpu.memory_space<semaphore_mem>> -> memref<1x!tpu.dma_semaphore, #tpu.memory_space<semaphore_mem>>
      %163 = tpu.memref_squeeze %162 : memref<1x!tpu.dma_semaphore, #tpu.memory_space<semaphore_mem>> -> memref<!tpu.dma_semaphore, #tpu.memory_space<semaphore_mem>>
      tpu.enqueue_dma source(%arg5 : memref<288x32xbf16, #tpu.memory_space<any>>) target(%arg11 : memref<288x32xbf16, #tpu.memory_space<vmem>>) target_semaphore(%163 : memref<!tpu.dma_semaphore, #tpu.memory_space<semaphore_mem>>)
      %c1_i32 = arith.constant 1 : i32
      %164 = tpu.memref_slice %arg13[%c1_i32] : memref<2x!tpu.dma_semaphore, #tpu.memory_space<semaphore_mem>> -> memref<1x!tpu.dma_semaphore, #tpu.memory_space<semaphore_mem>>
      %165 = tpu.memref_squeeze %164 : memref<1x!tpu.dma_semaphore, #tpu.memory_space<semaphore_mem>> -> memref<!tpu.dma_semaphore, #tpu.memory_space<semaphore_mem>>
      tpu.enqueue_dma source(%arg6 : memref<11x96xf32, #tpu.memory_space<any>>) target(%arg12 : memref<11x96xf32, #tpu.memory_space<vmem>>) target_semaphore(%165 : memref<!tpu.dma_semaphore, #tpu.memory_space<semaphore_mem>>)
      %c0_i32_78 = arith.constant 0 : i32
      %166 = tpu.memref_slice %arg13[%c0_i32_78] : memref<2x!tpu.dma_semaphore, #tpu.memory_space<semaphore_mem>> -> memref<1x!tpu.dma_semaphore, #tpu.memory_space<semaphore_mem>>
      %167 = tpu.memref_squeeze %166 : memref<1x!tpu.dma_semaphore, #tpu.memory_space<semaphore_mem>> -> memref<!tpu.dma_semaphore, #tpu.memory_space<semaphore_mem>>
      tpu.wait_dma2 semaphore(%167 : memref<!tpu.dma_semaphore, #tpu.memory_space<semaphore_mem>>) src(%arg5 : memref<288x32xbf16, #tpu.memory_space<any>>) dst(%arg11 : memref<288x32xbf16, #tpu.memory_space<vmem>>)
      %c1_i32_79 = arith.constant 1 : i32
      %168 = tpu.memref_slice %arg13[%c1_i32_79] : memref<2x!tpu.dma_semaphore, #tpu.memory_space<semaphore_mem>> -> memref<1x!tpu.dma_semaphore, #tpu.memory_space<semaphore_mem>>
      %169 = tpu.memref_squeeze %168 : memref<1x!tpu.dma_semaphore, #tpu.memory_space<semaphore_mem>> -> memref<!tpu.dma_semaphore, #tpu.memory_space<semaphore_mem>>
      tpu.wait_dma2 semaphore(%169 : memref<!tpu.dma_semaphore, #tpu.memory_space<semaphore_mem>>) src(%arg6 : memref<11x96xf32, #tpu.memory_space<any>>) dst(%arg12 : memref<11x96xf32, #tpu.memory_space<vmem>>)
    } else {
    }
    %c0 = arith.constant 0 : index
    %c0_1 = arith.constant 0 : index
    %3 = vector.load %arg11[%c0, %c0_1] : memref<288x32xbf16, #tpu.memory_space<vmem>>, vector<96x32xbf16>
    %c96 = arith.constant 96 : index
    %c0_2 = arith.constant 0 : index
    %4 = vector.load %arg11[%c96, %c0_2] : memref<288x32xbf16, #tpu.memory_space<vmem>>, vector<96x32xbf16>
    %c192 = arith.constant 192 : index
    %c0_3 = arith.constant 0 : index
    %5 = vector.load %arg11[%c192, %c0_3] : memref<288x32xbf16, #tpu.memory_space<vmem>>, vector<32x32xbf16>
    %c224 = arith.constant 224 : index
    %c0_4 = arith.constant 0 : index
    %6 = vector.load %arg11[%c224, %c0_4] : memref<288x32xbf16, #tpu.memory_space<vmem>>, vector<32x32xbf16>
    %c256 = arith.constant 256 : index
    %c0_5 = arith.constant 0 : index
    %7 = vector.load %arg11[%c256, %c0_5] : memref<288x32xbf16, #tpu.memory_space<vmem>>, vector<32x32xbf16>
    %c0_6 = arith.constant 0 : index
    %c0_7 = arith.constant 0 : index
    %8 = vector.load %arg12[%c0_6, %c0_7] : memref<11x96xf32, #tpu.memory_space<vmem>>, vector<1x96xf32>
    %c1 = arith.constant 1 : index
    %c0_8 = arith.constant 0 : index
    %9 = vector.load %arg12[%c1, %c0_8] : memref<11x96xf32, #tpu.memory_space<vmem>>, vector<1x96xf32>
    %c2 = arith.constant 2 : index
    %c0_9 = arith.constant 0 : index
    %10 = vector.load %arg12[%c2, %c0_9] : memref<11x96xf32, #tpu.memory_space<vmem>>, vector<1x32xf32>
    %c3 = arith.constant 3 : index
    %c0_10 = arith.constant 0 : index
    %11 = vector.load %arg12[%c3, %c0_10] : memref<11x96xf32, #tpu.memory_space<vmem>>, vector<1x32xf32>
    %c4 = arith.constant 4 : index
    %c0_11 = arith.constant 0 : index
    %12 = vector.load %arg12[%c4, %c0_11] : memref<11x96xf32, #tpu.memory_space<vmem>>, vector<1x32xf32>
    %c5 = arith.constant 5 : index
    %c0_12 = arith.constant 0 : index
    %13 = vector.load %arg12[%c5, %c0_12] : memref<11x96xf32, #tpu.memory_space<vmem>>, vector<1x32xf32>
    %c6 = arith.constant 6 : index
    %c0_13 = arith.constant 0 : index
    %14 = vector.load %arg12[%c6, %c0_13] : memref<11x96xf32, #tpu.memory_space<vmem>>, vector<1x32xf32>
    %c7 = arith.constant 7 : index
    %c0_14 = arith.constant 0 : index
    %15 = vector.load %arg12[%c7, %c0_14] : memref<11x96xf32, #tpu.memory_space<vmem>>, vector<1x32xf32>
    %c8 = arith.constant 8 : index
    %c0_15 = arith.constant 0 : index
    %16 = vector.load %arg12[%c8, %c0_15] : memref<11x96xf32, #tpu.memory_space<vmem>>, vector<1x32xf32>
    %c9 = arith.constant 9 : index
    %c0_16 = arith.constant 0 : index
    %17 = vector.load %arg12[%c9, %c0_16] : memref<11x96xf32, #tpu.memory_space<vmem>>, vector<1x32xf32>
    %c10 = arith.constant 10 : index
    %c0_17 = arith.constant 0 : index
    %18 = vector.load %arg12[%c10, %c0_17] : memref<11x96xf32, #tpu.memory_space<vmem>>, vector<1x1xf32>
    %c0_18 = arith.constant 0 : index
    %c0_19 = arith.constant 0 : index
    %c0_20 = arith.constant 0 : index
    %19 = vector.load %arg9[%c0_18, %c0_19, %c0_20] : memref<2x8x32xf32, #tpu.memory_space<vmem>>, vector<2x8x32xf32>
    %c0_21 = arith.constant 0 : index
    %c0_22 = arith.constant 0 : index
    %c0_23 = arith.constant 0 : index
    %20 = vector.load %arg10[%c0_21, %c0_22, %c0_23] : memref<2x8x8xf32, #tpu.memory_space<vmem>>, vector<2x8x8xf32>
    %21 = vector.shape_cast %19 : vector<2x8x32xf32> to vector<16x32xf32>
    %c0_24 = arith.constant 0 : index
    %c0_25 = arith.constant 0 : index
    %c0_26 = arith.constant 0 : index
    %22 = vector.load %arg2[%c0_24, %c0_25, %c0_26] : memref<2x8x32xf32, #tpu.memory_space<vmem>>, vector<2x8x32xf32>
    %23 = vector.shape_cast %22 : vector<2x8x32xf32> to vector<16x32xf32>
    %24 = arith.truncf %21 : vector<16x32xf32> to vector<16x32xbf16>
    %cst = arith.constant dense<0.000000e+00> : vector<16x32xf32>
    %25 = tpu.matmul %24, %5, %cst {dimension_numbers = #tpu.dot_dimension_numbers<[1], [0], [0], [1], [0, 0, 1, 1], [], []>} : vector<16x32xbf16>, vector<32x32xbf16>, vector<16x32xf32> -> vector<16x32xf32>
    %26 = vector.broadcast %10 : vector<1x32xf32> to vector<16x32xf32>
    %27 = arith.addf %25, %26 : vector<16x32xf32>
    %28 = vector.shape_cast %27 : vector<16x32xf32> to vector<2x8x32xf32>
    %29 = vector.shape_cast %28 : vector<2x8x32xf32> to vector<2x1x8x32xf32>
    %30 = vector.shape_cast %28 : vector<2x8x32xf32> to vector<2x8x1x32xf32>
    %31 = vector.broadcast %29 : vector<2x1x8x32xf32> to vector<2x8x8x32xf32>
    %32 = vector.broadcast %30 : vector<2x8x1x32xf32> to vector<2x8x8x32xf32>
    %33 = arith.addf %31, %32 : vector<2x8x8x32xf32>
    %34 = vector.shape_cast %20 : vector<2x8x8xf32> to vector<2x8x8x1xf32>
    %35 = vector.shape_cast %11 : vector<1x32xf32> to vector<1x1x1x32xf32>
    %36 = vector.broadcast %34 : vector<2x8x8x1xf32> to vector<2x8x8x32xf32>
    %37 = vector.broadcast %35 : vector<1x1x1x32xf32> to vector<2x8x8x32xf32>
    %38 = arith.mulf %36, %37 : vector<2x8x8x32xf32>
    %39 = arith.addf %33, %38 : vector<2x8x8x32xf32>
    %40 = vector.shape_cast %12 : vector<1x32xf32> to vector<1x1x1x32xf32>
    %41 = vector.broadcast %40 : vector<1x1x1x32xf32> to vector<2x8x8x32xf32>
    %42 = arith.addf %39, %41 : vector<2x8x8x32xf32>
    %cst_27 = arith.constant 0.000000e+00 : f32
    %43 = vector.broadcast %cst_27 : f32 to vector<2x8x8x32xf32>
    %44 = arith.maximumf %42, %43 : vector<2x8x8x32xf32>
    %45 = vector.shape_cast %17 : vector<1x32xf32> to vector<1x1x1x32xf32>
    %46 = vector.broadcast %45 : vector<1x1x1x32xf32> to vector<2x8x8x32xf32>
    %47 = arith.mulf %44, %46 : vector<2x8x8x32xf32>
    %cst_28 = arith.constant dense<0.000000e+00> : vector<2x8x8xf32>
    %48 = vector.multi_reduction <add>, %47, %cst_28 [3] : vector<2x8x8x32xf32> to vector<2x8x8xf32>
    %49 = vector.shape_cast %18 : vector<1x1xf32> to vector<1x1x1xf32>
    %50 = vector.broadcast %49 : vector<1x1x1xf32> to vector<2x8x8xf32>
    %51 = arith.addf %48, %50 : vector<2x8x8xf32>
    %cst_29 = arith.constant 0.000000e+00 : f32
    %52 = vector.broadcast %cst_29 : f32 to vector<2x8x8xf32>
    %53 = arith.subf %52, %51 : vector<2x8x8xf32>
    %54 = math.exp %53 : vector<2x8x8xf32>
    %cst_30 = arith.constant 1.000000e+00 : f32
    %55 = vector.broadcast %cst_30 : f32 to vector<2x8x8xf32>
    %56 = arith.addf %55, %54 : vector<2x8x8xf32>
    %cst_31 = arith.constant 1.000000e+00 : f32
    %57 = vector.broadcast %cst_31 : f32 to vector<2x8x8xf32>
    %58 = arith.divf %57, %56 : vector<2x8x8xf32>
    %59 = vector.extract_strided_slice %58 {offsets = [0, 0, 0], sizes = [1, 8, 8], strides = [1, 1, 1]} : vector<2x8x8xf32> to vector<1x8x8xf32>
    %60 = vector.shape_cast %59 : vector<1x8x8xf32> to vector<8x8xf32>
    %61 = vector.extract_strided_slice %19 {offsets = [0, 0, 0], sizes = [1, 8, 32], strides = [1, 1, 1]} : vector<2x8x32xf32> to vector<1x8x32xf32>
    %62 = vector.shape_cast %61 : vector<1x8x32xf32> to vector<8x32xf32>
    %cst_32 = arith.constant dense<0.000000e+00> : vector<8x32xf32>
    %63 = tpu.matmul %60, %62, %cst_32 {dimension_numbers = #tpu.dot_dimension_numbers<[0], [0], [1], [1], [0, 1, 1, 1], [], []>} : vector<8x8xf32>, vector<8x32xf32>, vector<8x32xf32> -> vector<8x32xf32>
    %64 = vector.extract_strided_slice %58 {offsets = [1, 0, 0], sizes = [1, 8, 8], strides = [1, 1, 1]} : vector<2x8x8xf32> to vector<1x8x8xf32>
    %65 = vector.shape_cast %64 : vector<1x8x8xf32> to vector<8x8xf32>
    %66 = vector.extract_strided_slice %19 {offsets = [1, 0, 0], sizes = [1, 8, 32], strides = [1, 1, 1]} : vector<2x8x32xf32> to vector<1x8x32xf32>
    %67 = vector.shape_cast %66 : vector<1x8x32xf32> to vector<8x32xf32>
    %cst_33 = arith.constant dense<0.000000e+00> : vector<8x32xf32>
    %68 = tpu.matmul %65, %67, %cst_33 {dimension_numbers = #tpu.dot_dimension_numbers<[0], [0], [1], [1], [0, 1, 1, 1], [], []>} : vector<8x8xf32>, vector<8x32xf32>, vector<8x32xf32> -> vector<8x32xf32>
    %69 = tpu.concatenate %63, %68 in 0 : vector<8x32xf32>, vector<8x32xf32> -> vector<16x32xf32>
    %70 = tpu.concatenate %23, %21, %69 in 1 : vector<16x32xf32>, vector<16x32xf32>, vector<16x32xf32> -> vector<16x96xf32>
    %cst_34 = arith.constant dense<0.000000e+00> : vector<16xf32>
    %71 = vector.multi_reduction <add>, %70, %cst_34 [1] : vector<16x96xf32> to vector<16xf32>
    %72 = vector.shape_cast %71 : vector<16xf32> to vector<16x1xf32>
    %cst_35 = arith.constant 9.600000e+01 : f32
    %73 = vector.broadcast %cst_35 : f32 to vector<16x1xf32>
    %74 = arith.divf %72, %73 : vector<16x1xf32>
    %75 = vector.broadcast %74 : vector<16x1xf32> to vector<16x96xf32>
    %76 = arith.subf %70, %75 : vector<16x96xf32>
    %77 = arith.mulf %76, %76 : vector<16x96xf32>
    %cst_36 = arith.constant dense<0.000000e+00> : vector<16xf32>
    %78 = vector.multi_reduction <add>, %77, %cst_36 [1] : vector<16x96xf32> to vector<16xf32>
    %79 = vector.shape_cast %78 : vector<16xf32> to vector<16x1xf32>
    %cst_37 = arith.constant 9.600000e+01 : f32
    %80 = vector.broadcast %cst_37 : f32 to vector<16x1xf32>
    %81 = arith.divf %79, %80 : vector<16x1xf32>
    %82 = vector.broadcast %74 : vector<16x1xf32> to vector<16x96xf32>
    %83 = arith.subf %70, %82 : vector<16x96xf32>
    %cst_38 = arith.constant 9.99999974E-6 : f32
    %84 = vector.broadcast %cst_38 : f32 to vector<16x1xf32>
    %85 = arith.addf %81, %84 : vector<16x1xf32>
    %86 = math.rsqrt %85 : vector<16x1xf32>
    %87 = vector.broadcast %86 : vector<16x1xf32> to vector<16x96xf32>
    %88 = arith.mulf %83, %87 : vector<16x96xf32>
    %89 = vector.broadcast %8 : vector<1x96xf32> to vector<16x96xf32>
    %90 = arith.mulf %88, %89 : vector<16x96xf32>
    %91 = vector.broadcast %9 : vector<1x96xf32> to vector<16x96xf32>
    %92 = arith.addf %90, %91 : vector<16x96xf32>
    %93 = vector.shape_cast %92 : vector<16x96xf32> to vector<2x8x96xf32>
    %cst_39 = arith.constant dense<0.000000e+00> : vector<2x96xf32>
    %94 = vector.multi_reduction <add>, %93, %cst_39 [1] : vector<2x8x96xf32> to vector<2x96xf32>
    %cst_40 = arith.constant 8.000000e+00 : f32
    %95 = vector.broadcast %cst_40 : f32 to vector<2x96xf32>
    %96 = arith.divf %94, %95 : vector<2x96xf32>
    %97 = arith.truncf %92 : vector<16x96xf32> to vector<16x96xbf16>
    %cst_41 = arith.constant dense<0.000000e+00> : vector<16x32xf32>
    %98 = tpu.matmul %97, %3, %cst_41 {dimension_numbers = #tpu.dot_dimension_numbers<[1], [0], [0], [1], [0, 0, 1, 1], [], []>} : vector<16x96xbf16>, vector<96x32xbf16>, vector<16x32xf32> -> vector<16x32xf32>
    %99 = vector.broadcast %13 : vector<1x32xf32> to vector<16x32xf32>
    %100 = arith.addf %98, %99 : vector<16x32xf32>
    %101 = arith.truncf %96 : vector<2x96xf32> to vector<2x96xbf16>
    %cst_42 = arith.constant dense<0.000000e+00> : vector<2x32xf32>
    %102 = tpu.matmul %101, %4, %cst_42 {dimension_numbers = #tpu.dot_dimension_numbers<[1], [0], [0], [1], [0, 0, 1, 1], [], []>} : vector<2x96xbf16>, vector<96x32xbf16>, vector<2x32xf32> -> vector<2x32xf32>
    %103 = vector.shape_cast %100 : vector<16x32xf32> to vector<2x8x32xf32>
    %104 = vector.shape_cast %102 : vector<2x32xf32> to vector<2x1x32xf32>
    %105 = vector.broadcast %104 : vector<2x1x32xf32> to vector<2x8x32xf32>
    %106 = arith.subf %103, %105 : vector<2x8x32xf32>
    %cst_43 = arith.constant 0.000000e+00 : f32
    %107 = vector.broadcast %cst_43 : f32 to vector<2x8x32xf32>
    %108 = arith.maximumf %106, %107 : vector<2x8x32xf32>
    %109 = vector.shape_cast %108 : vector<2x8x32xf32> to vector<16x32xf32>
    %cst_44 = arith.constant dense<0.000000e+00> : vector<2x32xf32>
    %110 = vector.multi_reduction <add>, %108, %cst_44 [1] : vector<2x8x32xf32> to vector<2x32xf32>
    %cst_45 = arith.constant 8.000000e+00 : f32
    %111 = vector.broadcast %cst_45 : f32 to vector<2x32xf32>
    %112 = arith.divf %110, %111 : vector<2x32xf32>
    %113 = arith.truncf %109 : vector<16x32xf32> to vector<16x32xbf16>
    %cst_46 = arith.constant dense<0.000000e+00> : vector<16x32xf32>
    %114 = tpu.matmul %113, %6, %cst_46 {dimension_numbers = #tpu.dot_dimension_numbers<[1], [0], [0], [1], [0, 0, 1, 1], [], []>} : vector<16x32xbf16>, vector<32x32xbf16>, vector<16x32xf32> -> vector<16x32xf32>
    %115 = vector.broadcast %14 : vector<1x32xf32> to vector<16x32xf32>
    %116 = arith.addf %114, %115 : vector<16x32xf32>
    %117 = arith.truncf %112 : vector<2x32xf32> to vector<2x32xbf16>
    %cst_47 = arith.constant dense<0.000000e+00> : vector<2x32xf32>
    %118 = tpu.matmul %117, %7, %cst_47 {dimension_numbers = #tpu.dot_dimension_numbers<[1], [0], [0], [1], [0, 0, 1, 1], [], []>} : vector<2x32xbf16>, vector<32x32xbf16>, vector<2x32xf32> -> vector<2x32xf32>
    %119 = vector.shape_cast %116 : vector<16x32xf32> to vector<2x8x32xf32>
    %120 = vector.shape_cast %118 : vector<2x32xf32> to vector<2x1x32xf32>
    %121 = vector.broadcast %120 : vector<2x1x32xf32> to vector<2x8x32xf32>
    %122 = arith.subf %119, %121 : vector<2x8x32xf32>
    %123 = vector.shape_cast %122 : vector<2x8x32xf32> to vector<16x32xf32>
    %124 = arith.addf %21, %123 : vector<16x32xf32>
    %cst_48 = arith.constant dense<0.000000e+00> : vector<16xf32>
    %125 = vector.multi_reduction <add>, %124, %cst_48 [1] : vector<16x32xf32> to vector<16xf32>
    %126 = vector.shape_cast %125 : vector<16xf32> to vector<16x1xf32>
    %cst_49 = arith.constant 3.200000e+01 : f32
    %127 = vector.broadcast %cst_49 : f32 to vector<16x1xf32>
    %128 = arith.divf %126, %127 : vector<16x1xf32>
    %129 = vector.broadcast %128 : vector<16x1xf32> to vector<16x32xf32>
    %130 = arith.subf %124, %129 : vector<16x32xf32>
    %131 = arith.mulf %130, %130 : vector<16x32xf32>
    %cst_50 = arith.constant dense<0.000000e+00> : vector<16xf32>
    %132 = vector.multi_reduction <add>, %131, %cst_50 [1] : vector<16x32xf32> to vector<16xf32>
    %133 = vector.shape_cast %132 : vector<16xf32> to vector<16x1xf32>
    %cst_51 = arith.constant 3.200000e+01 : f32
    %134 = vector.broadcast %cst_51 : f32 to vector<16x1xf32>
    %135 = arith.divf %133, %134 : vector<16x1xf32>
    %136 = vector.broadcast %128 : vector<16x1xf32> to vector<16x32xf32>
    %137 = arith.subf %124, %136 : vector<16x32xf32>
    %cst_52 = arith.constant 9.99999974E-6 : f32
    %138 = vector.broadcast %cst_52 : f32 to vector<16x1xf32>
    %139 = arith.addf %135, %138 : vector<16x1xf32>
    %140 = math.rsqrt %139 : vector<16x1xf32>
    %141 = vector.broadcast %140 : vector<16x1xf32> to vector<16x32xf32>
    %142 = arith.mulf %137, %141 : vector<16x32xf32>
    %143 = vector.broadcast %15 : vector<1x32xf32> to vector<16x32xf32>
    %144 = arith.mulf %142, %143 : vector<16x32xf32>
    %145 = vector.broadcast %16 : vector<1x32xf32> to vector<16x32xf32>
    %146 = arith.addf %144, %145 : vector<16x32xf32>
    %147 = vector.shape_cast %146 : vector<16x32xf32> to vector<2x8x32xf32>
    %c0_53 = arith.constant 0 : index
    %c0_54 = arith.constant 0 : index
    %c0_55 = arith.constant 0 : index
    %148 = vector.load %arg9[%c0_53, %c0_54, %c0_55] : memref<2x8x32xf32, #tpu.memory_space<vmem>>, vector<2x8x32xf32>
    tpu.vector_store %arg9[%c0_53, %c0_54, %c0_55], %147 {strides = array<i32>} : memref<2x8x32xf32, #tpu.memory_space<vmem>>, vector<2x8x32xf32>,
    %c0_56 = arith.constant 0 : index
    %c0_57 = arith.constant 0 : index
    %c0_58 = arith.constant 0 : index
    %149 = vector.load %arg10[%c0_56, %c0_57, %c0_58] : memref<2x8x8xf32, #tpu.memory_space<vmem>>, vector<2x8x8xf32>
    tpu.vector_store %arg10[%c0_56, %c0_57, %c0_58], %58 {strides = array<i32>} : memref<2x8x8xf32, #tpu.memory_space<vmem>>, vector<2x8x8xf32>,
    %cst_59 = arith.constant 0.000000e+00 : f32
    %150 = vector.broadcast %cst_59 : f32 to vector<2x8x120xf32>
    %151 = tpu.concatenate %58, %150 in 2 : vector<2x8x8xf32>, vector<2x8x120xf32> -> vector<2x8x128xf32>
    %c0_60 = arith.constant 0 : index
    %c0_61 = arith.constant 0 : index
    %c0_62 = arith.constant 0 : index
    %c0_63 = arith.constant 0 : index
    %152 = vector.load %arg7[%c0_60, %c0_61, %c0_62, %c0_63] : memref<1x2x8x128xf32, #tpu.memory_space<vmem>>, vector<1x2x8x128xf32>
    %153 = vector.shape_cast %152 : vector<1x2x8x128xf32> to vector<2x8x128xf32>
    %154 = vector.shape_cast %151 : vector<2x8x128xf32> to vector<1x2x8x128xf32>
    tpu.vector_store %arg7[%c0_60, %c0_61, %c0_62, %c0_63], %154 {strides = array<i32>} : memref<1x2x8x128xf32, #tpu.memory_space<vmem>>, vector<1x2x8x128xf32>,
    %c2_i32 = arith.constant 2 : i32
    %155 = arith.cmpi eq, %arg1, %c2_i32 : i32
    %156 = arith.extui %155 : i1 to i32
    %c0_i32_64 = arith.constant 0 : i32
    %157 = arith.cmpi ne, %156, %c0_i32_64 : i32
    scf.if %157 {
      %158 = vector.shape_cast %146 : vector<16x32xf32> to vector<2x8x32xf32>
      %c0_65 = arith.constant 0 : index
      %c0_66 = arith.constant 0 : index
      %c0_67 = arith.constant 0 : index
      %159 = vector.load %arg8[%c0_65, %c0_66, %c0_67] : memref<2x8x32xf32, #tpu.memory_space<vmem>>, vector<2x8x32xf32>
      tpu.vector_store %arg8[%c0_65, %c0_66, %c0_67], %158 {strides = array<i32>} : memref<2x8x32xf32, #tpu.memory_space<vmem>>, vector<2x8x32xf32>,
    } else {
    }
    return
  }
  func.func @transform_0(%arg0: i32, %arg1: i32) -> (i32, i32, i32) {
    %c0_i32 = arith.constant 0 : i32
    %c0_i32_0 = arith.constant 0 : i32
    %c0_i32_1 = arith.constant 0 : i32
    return %arg0, %c0_i32, %c0_i32_0 : i32, i32, i32
  }
  func.func @transform_1(%arg0: i32, %arg1: i32) -> (i32, i32, i32) {
    %c0_i32 = arith.constant 0 : i32
    %c0_i32_0 = arith.constant 0 : i32
    %c0_i32_1 = arith.constant 0 : i32
    return %arg0, %c0_i32, %c0_i32_0 : i32, i32, i32
  }
  func.func @transform_2(%arg0: i32, %arg1: i32) -> (i32, i32, i32) {
    %c0_i32 = arith.constant 0 : i32
    %c0_i32_0 = arith.constant 0 : i32
    %c0_i32_1 = arith.constant 0 : i32
    return %arg0, %c0_i32, %c0_i32_0 : i32, i32, i32
  }
  func.func @transform_5(%arg0: i32, %arg1: i32) -> (i32, i32, i32, i32) {
    %c0_i32 = arith.constant 0 : i32
    %c0_i32_0 = arith.constant 0 : i32
    %c0_i32_1 = arith.constant 0 : i32
    return %arg1, %arg0, %c0_i32, %c0_i32_0 : i32, i32, i32, i32
  }
  func.func @transform_6(%arg0: i32, %arg1: i32) -> (i32, i32, i32) {
    %c0_i32 = arith.constant 0 : i32
    %c0_i32_0 = arith.constant 0 : i32
    %c0_i32_1 = arith.constant 0 : i32
    return %arg0, %c0_i32, %c0_i32_0 : i32, i32, i32
  }
}

</mosaic_0001>

<llo_original>
// kernel: tpu_custom_call.1
$region0: #{tpu_custom_call.1}
  #allocation0 [shape = 'u32[]', space=smem, size = 0x4, offset = 0x4, fixed_abs, tag = 'smem constant byte address 0x4 - core index']
  #allocation1 [shape = 'u32[144,128]{1,0:T(1,128)}', space=vmem, size = 0x12000, scoped, tag = 'internal scratch']
  #allocation2 [shape = 'f32[2,8,32]{2,1,0:T(8,128)}', space=vmem, size = 0x2000, scoped, tag = 'scratch operand']
  #allocation3 [shape = 'f32[2,8,8]{2,1,0:T(8,128)}', space=vmem, size = 0x2000, scoped, tag = 'scratch operand']
  #allocation4 [shape = 'bf16[288,32]{1,0:T(8,128)(2,1)}', space=vmem, size = 0x12000, scoped, tag = 'scratch operand']
  #allocation5 [shape = 'f32[11,96]{1,0:T(8,128)}', space=vmem, size = 0x2000, scoped, tag = 'scratch operand']
  #allocation6 [shape = 's32[2]{0}', space=sflag, size = 0x8, scoped, tag = 'scratch operand']
  #allocation11 [shape = 's32[]', space=sflag, size = 0x4, offset = 0, fixed_abs, tag = 'sflag constant byte address 0x0 - dummy sync flag']
  #allocation12 [shape = 's32[]', space=sflag, size = 0x4, offset = 0, fixed_abs, tag = 'sflag constant byte address 0x0 - dummy sync flag']
  %s0 = inlined_call_operand.vmem [shape: f32[2,8,32], index: 0, kind: input, shape index: {}]
  %s1 = inlined_call_operand.vmem [shape: f32[2,8,32], index: 1, kind: input, shape index: {}]
  %s2 = inlined_call_operand.vmem [shape: f32[2,8,8], index: 2, kind: input, shape index: {}]
  %s3 = inlined_call_operand.vmem [shape: bf16[288,32], index: 3, kind: input, shape index: {}]
  %s4 = inlined_call_operand.vmem [shape: f32[11,96], index: 4, kind: input, shape index: {}]
  %s5 = inlined_call_operand.hbm [shape: f32[3,2,8,128], index: 5, kind: output, shape index: {0}]
  %s6 = inlined_call_operand.hbm [shape: f32[2,8,32], index: 6, kind: output, shape index: {1}]
  %7 = xla_tuple %s5, %s6
  %s8 = sld [smem:[#allocation0]]
  $region132: #{tpu_custom_call.1} parent=0
    _
  %s10 = ssub.s32 1, %s8
  %s11 = scalar_select 0, %s10, %s8
  $region1: #{tpu_custom_call.1} parent=0
    #allocation7 [shape = 'u8[16384]{0}', space=vmem, size = 0x4000, scoped, tag = 'output window, operand 0']
    #allocation8 [shape = 's32[2]{0}', space=sflag, size = 0x8, scoped, tag = 'scoped memory for tpu_custom_call.1']
    #allocation9 [shape = 'u8[8192]{0}', space=vmem, size = 0x2000, scoped, tag = 'output window, operand 1, single buffered']
    #allocation10 [shape = 's32[1]{0}', space=sflag, size = 0x4, scoped, tag = 'scoped memory for tpu_custom_call.1']
    %12 = vsyncpa [#allocation8], 0
    %s13 = scalar_lea.sflag [#allocation8], 1
    %14 = vsyncpa %s13, 0
    %15 = vsyncpa [#allocation10], 0
    loop: start=0, step=1, limit=5
    $region2: #{tpu_custom_call.1} parent=1 // loop_pre_header
      _
    $region3: #{tpu_custom_call.1} parent=1 // loop_header
      %s17 = sphi 0, %s21
      %p18 = scmp.ge.s32.totalorder %s17, 5
      %s24 = sphi 0, %s36
      %s25 = sphi 0, %s32
      %s26 = sphi 0, %s24
      %s27 = sphi 0, %s25
      %s28 = sphi 0, %s26
      %s29 = sphi 0, %s27
      %s39 = sphi 0, %s41
      %s42 = sphi 0, %s39
      %s43 = sphi 0, %s42
      %s59 = sphi 0, %s43
      %s65 = sphi 0, %s67
      %s68 = sphi 0, %s65
      %s69 = sphi 0, %s68
      %s85 = sphi 0, %s69
      %s91 = sphi 0, %s93
      %s94 = sphi 0, %s91
      %s95 = sphi 0, %s94
      %s111 = sphi 0, %s95
      %s119 = sphi 0, %s121
      %s122 = sphi 0, %s119
      %s123 = sphi 0, %s122
      %s139 = sphi 0, %s123
      %s145 = sphi 0, %s147
      %s148 = sphi 0, %s145
      %s149 = sphi 0, %s148
      %s165 = sphi 0, %s149
    $region4: #{tpu_custom_call.1} parent=1 // loop_header_branch
      %20 = sbr.rel (%p18) target = $region8
    $region5: #{tpu_custom_call.1} parent=1 // loop_body
      %s22 = ssub.s32 %s17, 1
      %s23 = ssub.s32 %s17, 2
      %s30 = sadd.s32 1, %s25
      %p31 = scmp.ge.s32.totalorder %s30, 3
      %s32 = scalar_select %p31, 0, %s30
      %s33 = sadd.s32 1, %s24
      %s34 = scalar_select %p31, %s33, %s24
      %p35 = scmp.ge.s32.totalorder %s34, 1
      %s36 = scalar_select %p35, 0, %s34
      %s37 = ssub.s32 %s24, %s36
      %p38 = scmp.eq.s32.totalorder %s37, 0
      %s40 = sadd.s32 %s39, 1
      %s41 = scalar_select %p38, %s39, %s40
      %p44 = pneg %p38
      %p45 = scmp.eq.s32.totalorder %s17, 2
      %p46 = por %p44, %p45
      %p47 = scmp.ne.s32.totalorder %s39, %s42
      %p48 = scmp.eq.s32.totalorder %s17, 0
      %p49 = por %p47, %p48
      %p50 = scmp.ne.s32.totalorder %s39, %s42
      %p51 = scmp.eq.s32.totalorder %s22, 2
      %p52 = por %p50, %p51
      %p53 = scmp.ne.s32.totalorder %s42, %s43
      %p54 = scmp.eq.s32.totalorder %s22, 0
      %p55 = por %p53, %p54
      %p56 = scmp.ne.s32.totalorder %s42, %s43
      %p57 = scmp.eq.s32.totalorder %s23, 2
      %p58 = por %p56, %p57
      %p60 = scmp.ne.s32.totalorder %s43, %s59
      %p61 = scmp.eq.s32.totalorder %s23, 0
      %p62 = por %p60, %p61
      %s63 = ssub.s32 %s24, %s36
      %p64 = scmp.eq.s32.totalorder %s63, 0
      %s66 = sadd.s32 %s65, 1
      %s67 = scalar_select %p64, %s65, %s66
      %p70 = pneg %p64
      %p71 = scmp.eq.s32.totalorder %s17, 2
      %p72 = por %p70, %p71
      %p73 = scmp.ne.s32.totalorder %s65, %s68
      %p74 = scmp.eq.s32.totalorder %s17, 0
      %p75 = por %p73, %p74
      %p76 = scmp.ne.s32.totalorder %s65, %s68
      %p77 = scmp.eq.s32.totalorder %s22, 2
      %p78 = por %p76, %p77
      %p79 = scmp.ne.s32.totalorder %s68, %s69
      %p80 = scmp.eq.s32.totalorder %s22, 0
      %p81 = por %p79, %p80
      %p82 = scmp.ne.s32.totalorder %s68, %s69
      %p83 = scmp.eq.s32.totalorder %s23, 2
      %p84 = por %p82, %p83
      %p86 = scmp.ne.s32.totalorder %s69, %s85
      %p87 = scmp.eq.s32.totalorder %s23, 0
      %p88 = por %p86, %p87
      %s89 = ssub.s32 %s24, %s36
      %p90 = scmp.eq.s32.totalorder %s89, 0
      %s92 = sadd.s32 %s91, 1
      %s93 = scalar_select %p90, %s91, %s92
      %p96 = pneg %p90
      %p97 = scmp.eq.s32.totalorder %s17, 2
      %p98 = por %p96, %p97
      %p99 = scmp.ne.s32.totalorder %s91, %s94
      %p100 = scmp.eq.s32.totalorder %s17, 0
      %p101 = por %p99, %p100
      %p102 = scmp.ne.s32.totalorder %s91, %s94
      %p103 = scmp.eq.s32.totalorder %s22, 2
      %p104 = por %p102, %p103
      %p105 = scmp.ne.s32.totalorder %s94, %s95
      %p106 = scmp.eq.s32.totalorder %s22, 0
      %p107 = por %p105, %p106
      %p108 = scmp.ne.s32.totalorder %s94, %s95
      %p109 = scmp.eq.s32.totalorder %s23, 2
      %p110 = por %p108, %p109
      %p112 = scmp.ne.s32.totalorder %s95, %s111
      %p113 = scmp.eq.s32.totalorder %s23, 0
      %p114 = por %p112, %p113
      %s115 = ssub.s32 %s25, %s32
      %s116 = ssub.s32 %s24, %s36
      %s117 = sor.u32 %s115, %s116
      %p118 = scmp.eq.s32.totalorder %s117, 0
      %s120 = sadd.s32 %s119, 1
      %s121 = scalar_select %p118, %s119, %s120
      %p124 = pneg %p118
      %p125 = scmp.eq.s32.totalorder %s17, 2
      %p126 = por %p124, %p125
      %p127 = scmp.ne.s32.totalorder %s119, %s122
      %p128 = scmp.eq.s32.totalorder %s17, 0
      %p129 = por %p127, %p128
      %p130 = scmp.ne.s32.totalorder %s119, %s122
      %p131 = scmp.eq.s32.totalorder %s22, 2
      %p132 = por %p130, %p131
      %p133 = scmp.ne.s32.totalorder %s122, %s123
      %p134 = scmp.eq.s32.totalorder %s22, 0
      %p135 = por %p133, %p134
      %p136 = scmp.ne.s32.totalorder %s122, %s123
      %p137 = scmp.eq.s32.totalorder %s23, 2
      %p138 = por %p136, %p137
      %p140 = scmp.ne.s32.totalorder %s123, %s139
      %p141 = scmp.eq.s32.totalorder %s23, 0
      %p142 = por %p140, %p141
      %s143 = ssub.s32 %s24, %s36
      %p144 = scmp.eq.s32.totalorder %s143, 0
      %s146 = sadd.s32 %s145, 1
      %s147 = scalar_select %p144, %s145, %s146
      %p150 = pneg %p144
      %p151 = scmp.eq.s32.totalorder %s17, 2
      %p152 = por %p150, %p151
      %p153 = scmp.ne.s32.totalorder %s145, %s148
      %p154 = scmp.eq.s32.totalorder %s17, 0
      %p155 = por %p153, %p154
      %p156 = scmp.ne.s32.totalorder %s145, %s148
      %p157 = scmp.eq.s32.totalorder %s22, 2
      %p158 = por %p156, %p157
      %p159 = scmp.ne.s32.totalorder %s148, %s149
      %p160 = scmp.eq.s32.totalorder %s22, 0
      %p161 = por %p159, %p160
      %p162 = scmp.ne.s32.totalorder %s148, %s149
      %p163 = scmp.eq.s32.totalorder %s23, 2
      %p164 = por %p162, %p163
      %p166 = scmp.ne.s32.totalorder %s149, %s165
      %p167 = scmp.eq.s32.totalorder %s23, 0
      %p168 = por %p166, %p167
      %p169 = scmp.le.s32.totalorder 1, %s17
      %p170 = scmp.lt.s32.totalorder %s17, 4
      %p171 = pnand %p169, %p170
      %p172 = pneg %p171
      // Predicated region
      $region9: #{tpu_custom_call.1} parent=5 // pred_check
        _
      $region10: #{tpu_custom_call.1} parent=5 // pred_check_branch
        %174 = sbr.rel (%p171) target = $region12
      $region11: #{tpu_custom_call.1} parent=5 // pred_region
        %s175 = ssub.s32 %s17, 1
        // Predicated region
        $region13: #{tpu_custom_call.1} parent=11 // pred_check
          %p176 = pneg %p55
        $region14: #{tpu_custom_call.1} parent=11 // pred_check_branch
          %178 = sbr.rel (%p176) target = $region16
        $region15: #{tpu_custom_call.1} parent=11 // pred_region
          %s179 = smul.u32 2, %s26
          %p180 = scmp.lt.s32.totalorder %s179, 1
          %s181 = scalar_select %p180, %s179, 1
          %s182 = smul.addr %s181, 8
          %s183 = scalar_lea.vmem %s0, %s182
          %s184 = smul.u32 2, %s26
        $region16: #{tpu_custom_call.1} parent=11 // pred_fallthru
          _
        // Predicated region
        $region17: #{tpu_custom_call.1} parent=11 // pred_check
          %p185 = pneg %p81
        $region18: #{tpu_custom_call.1} parent=11 // pred_check_branch
          %187 = sbr.rel (%p185) target = $region20
        $region19: #{tpu_custom_call.1} parent=11 // pred_region
          %s188 = smul.u32 2, %s26
          %p189 = scmp.lt.s32.totalorder %s188, 1
          %s190 = scalar_select %p189, %s188, 1
          %s191 = smul.addr %s190, 8
          %s192 = scalar_lea.vmem %s1, %s191
          %s193 = smul.u32 2, %s26
        $region20: #{tpu_custom_call.1} parent=11 // pred_fallthru
          _
        // Predicated region
        $region21: #{tpu_custom_call.1} parent=11 // pred_check
          %p194 = pneg %p107
        $region22: #{tpu_custom_call.1} parent=11 // pred_check_branch
          %196 = sbr.rel (%p194) target = $region24
        $region23: #{tpu_custom_call.1} parent=11 // pred_region
          %s197 = smul.u32 2, %s26
          %p198 = scmp.lt.s32.totalorder %s197, 1
          %s199 = scalar_select %p198, %s197, 1
          %s200 = smul.addr %s199, 8
          %s201 = scalar_lea.vmem %s2, %s200
          %s202 = smul.u32 2, %s26
        $region24: #{tpu_custom_call.1} parent=11 // pred_fallthru
          _
      $region12: #{tpu_custom_call.1} parent=5 // pred_fallthru
        _
      %p203 = scmp.lt.s32.totalorder %s17, 3
      // Predicated region
      $region25: #{tpu_custom_call.1} parent=5 // pred_check
        %p204 = pneg %p203
      $region26: #{tpu_custom_call.1} parent=5 // pred_check_branch
        %206 = sbr.rel (%p204) target = $region28
      $region27: #{tpu_custom_call.1} parent=5 // pred_region
        _
      $region28: #{tpu_custom_call.1} parent=5 // pred_fallthru
        _
      %p207 = scmp.le.s32.totalorder 1, %s17
      %p208 = scmp.lt.s32.totalorder %s17, 4
      %p209 = pnand %p207, %p208
      %p210 = pneg %p209
      // Predicated region
      $region29: #{tpu_custom_call.1} parent=5 // pred_check
        _
      $region30: #{tpu_custom_call.1} parent=5 // pred_check_branch
        %212 = sbr.rel (%p209) target = $region32
      $region31: #{tpu_custom_call.1} parent=5 // pred_region
        %s213 = ssub.s32 %s17, 1
        %s214 = smul.u32 2, %s26
        %p215 = scmp.lt.s32.totalorder %s214, 1
        %s216 = scalar_select %p215, %s214, 1
        %s217 = smul.addr %s216, 8
        %s218 = scalar_lea.vmem %s0, %s217
        %p219 = pneg %p55
        %p220 = pneg %p52
        %s221 = smul.u32 2, %s26
        %p222 = scmp.lt.s32.totalorder %s221, 1
        %s223 = scalar_select %p222, %s221, 1
        %s224 = smul.addr %s223, 8
        %s225 = scalar_lea.vmem %s1, %s224
        %p226 = pneg %p81
        %p227 = pneg %p78
        %s228 = smul.u32 2, %s26
        %p229 = scmp.lt.s32.totalorder %s228, 1
        %s230 = scalar_select %p229, %s228, 1
        %s231 = smul.addr %s230, 8
        %s232 = scalar_lea.vmem %s2, %s231
        %p233 = pneg %p107
        %p234 = pneg %p104
        %p235 = pneg %p135
        %p236 = pneg %p132
        %s237 = sand.u32 %s122, 1
        %s238 = scalar_lea.sflag [#allocation8], %s237
        %s239 = sand.u32 %s122, 1
        %s240 = smul.addr %s239, 16
        %s241 = scalar_lea.vmem [#allocation7], %s240
        %p242 = pneg %p161
        %p243 = pneg %p158
        %s244 = smul.u32 2, %s26
        %p245 = scmp.lt.s32.totalorder %s244, 1
        %s246 = scalar_select %p245, %s244, 1
        %s247 = smul.addr %s246, 8
        %s248 = scalar_lea.vmem %s0, %s247
        %s249 = smul.u32 2, %s26
        %s250 = smul.u32 2, %s26
        %p251 = scmp.lt.s32.totalorder %s250, 1
        %s252 = scalar_select %p251, %s250, 1
        %s253 = smul.addr %s252, 8
        %s254 = scalar_lea.vmem %s1, %s253
        %s255 = smul.u32 2, %s26
        %s256 = smul.u32 2, %s26
        %p257 = scmp.lt.s32.totalorder %s256, 1
        %s258 = scalar_select %p257, %s256, 1
        %s259 = smul.addr %s258, 8
        %s260 = scalar_lea.vmem %s2, %s259
        %s261 = smul.u32 2, %s26
        %s262 = smul.u32 2, %s26
        %s263 = smul.u32 2, %s26
        %p265 = scmp.eq.s32.totalorder %s27, 0
        // Predicated region
        $region33: #{tpu_custom_call.1} parent=31 // pred_check
          %p266 = pneg %p265
        $region34: #{tpu_custom_call.1} parent=31 // pred_check_branch
          %268 = sbr.rel (%p266) target = $region36
        $region35: #{tpu_custom_call.1} parent=31 // pred_region
          %v269 = vld [vmem:[%s254] sm:$0xff]
          %v270 = vld [vmem:[%s254 + $0x8] sm:$0xff]
          %vm271 = vcmask 261120
          %272 = vst.msk [vmem:[#allocation2] sm:$0xff] %vm271, %v269
          %273 = vst.msk [vmem:[#allocation2 + $0x8] sm:$0xff] %vm271, %v270
          %v274 = vld [vmem:[%s260] sm:$0xff]
          %v275 = vld [vmem:[%s260 + $0x8] sm:$0xff]
          %vm276 = vcmask 64512
          %277 = vst.msk [vmem:[#allocation3] sm:$0xff] %vm276, %v274
          %278 = vst.msk [vmem:[#allocation3 + $0x8] sm:$0xff] %vm276, %v275
          %p280 = scmp.lt.u32.totalorder 144, 8
          %p281 = pneg %p280
          // Predicated region
          $region37: #{tpu_custom_call.1} parent=35 // pred_check
            _
          $region38: #{tpu_custom_call.1} parent=35 // pred_check_branch
            %283 = sbr.rel (%p280) target = $region40
          $region39: #{tpu_custom_call.1} parent=35 // pred_region
            %s299 = sand.u32 144, 7
            %p300 = scmp.eq.s32.totalorder %s299, 0
            // Predicated region
            $region52: #{tpu_custom_call.1} parent=39 // pred_check
              %p301 = pneg %p300
            $region53: #{tpu_custom_call.1} parent=39 // pred_check_branch
              %303 = sbr.rel (%p301) target = $region55
            $region54: #{tpu_custom_call.1} parent=39 // pred_region
              loop: start=0, step=1, limit=1
              $region56: #{tpu_custom_call.1} parent=54 // loop_pre_header
                _
              $region57: #{tpu_custom_call.1} parent=54 // loop_header
                %s305 = sphi 0, %s309
                %p306 = scmp.ge.s32.totalorder %s305, 1
                %s310 = sphi %s3, %s3
                %s311 = sphi [#allocation4], [#allocation4]
              $region58: #{tpu_custom_call.1} parent=54 // loop_header_branch
                %308 = sbr.rel (%p306) target = $region62
              $region59: #{tpu_custom_call.1} parent=54 // loop_body
                %v312 = vld [vmem:[%s310] sm:$0xff]
                %313 = vst [vmem:[%s311] sm:$0xff] %v312
                %v314 = vld [vmem:[%s310 + $0x8] sm:$0xff]
                %315 = vst [vmem:[%s311 + $0x8] sm:$0xff] %v314
                %v316 = vld [vmem:[%s310 + $0x10] sm:$0xff]
                %317 = vst [vmem:[%s311 + $0x10] sm:$0xff] %v316
                %v318 = vld [vmem:[%s310 + $0x18] sm:$0xff]
                %319 = vst [vmem:[%s311 + $0x18] sm:$0xff] %v318
                %v320 = vld [vmem:[%s310 + $0x20] sm:$0xff]
                %321 = vst [vmem:[%s311 + $0x20] sm:$0xff] %v320
                %v322 = vld [vmem:[%s310 + $0x28] sm:$0xff]
                %323 = vst [vmem:[%s311 + $0x28] sm:$0xff] %v322
                %v324 = vld [vmem:[%s310 + $0x30] sm:$0xff]
                %325 = vst [vmem:[%s311 + $0x30] sm:$0xff] %v324
                %v326 = vld [vmem:[%s310 + $0x38] sm:$0xff]
                %327 = vst [vmem:[%s311 + $0x38] sm:$0xff] %v326
                %v328 = vld [vmem:[%s310 + $0x40] sm:$0xff]
                %329 = vst [vmem:[%s311 + $0x40] sm:$0xff] %v328
                %v330 = vld [vmem:[%s310 + $0x48] sm:$0xff]
                %331 = vst [vmem:[%s311 + $0x48] sm:$0xff] %v330
                %v332 = vld [vmem:[%s310 + $0x50] sm:$0xff]
                %333 = vst [vmem:[%s311 + $0x50] sm:$0xff] %v332
                %v334 = vld [vmem:[%s310 + $0x58] sm:$0xff]
                %335 = vst [vmem:[%s311 + $0x58] sm:$0xff] %v334
                %v336 = vld [vmem:[%s310 + $0x60] sm:$0xff]
                %337 = vst [vmem:[%s311 + $0x60] sm:$0xff] %v336
                %v338 = vld [vmem:[%s310 + $0x68] sm:$0xff]
                %339 = vst [vmem:[%s311 + $0x68] sm:$0xff] %v338
                %v340 = vld [vmem:[%s310 + $0x70] sm:$0xff]
                %341 = vst [vmem:[%s311 + $0x70] sm:$0xff] %v340
                %v342 = vld [vmem:[%s310 + $0x78] sm:$0xff]
                %343 = vst [vmem:[%s311 + $0x78] sm:$0xff] %v342
                %v344 = vld [vmem:[%s310 + $0x80] sm:$0xff]
                %345 = vst [vmem:[%s311 + $0x80] sm:$0xff] %v344
                %v346 = vld [vmem:[%s310 + $0x88] sm:$0xff]
                %347 = vst [vmem:[%s311 + $0x88] sm:$0xff] %v346
              $region60: #{tpu_custom_call.1} parent=54 // loop_footer
                %s309 = sadd.s32 1, %s305
              $region61: #{tpu_custom_call.1} parent=54 // loop_footer_branch
                %304 = sbr.rel target = $region57
              $region62: #{tpu_custom_call.1} parent=54 // loop_exit
                _
            $region55: #{tpu_custom_call.1} parent=39 // pred_fallthru
              _
            %p348 = pneg %p300
            // Predicated region
            $region63: #{tpu_custom_call.1} parent=39 // pred_check
              _
            $region64: #{tpu_custom_call.1} parent=39 // pred_check_branch
              %350 = sbr.rel (%p300) target = $region66
            $region65: #{tpu_custom_call.1} parent=39 // pred_region
              %s351 = sand.u32 144, 7
            $region66: #{tpu_custom_call.1} parent=39 // pred_fallthru
              _
          $region40: #{tpu_custom_call.1} parent=35 // pred_fallthru
            _
          // Predicated region
          $region41: #{tpu_custom_call.1} parent=35 // pred_check
            %p284 = pneg %p280
          $region42: #{tpu_custom_call.1} parent=35 // pred_check_branch
            %286 = sbr.rel (%p284) target = $region44
          $region43: #{tpu_custom_call.1} parent=35 // pred_region
            %s287 = sshll.u32 1, 144
            %s288 = ssub.s32 %s287, 1
            loop: start=0, step=1, limit=1
            $region45: #{tpu_custom_call.1} parent=43 // loop_pre_header
              _
            $region46: #{tpu_custom_call.1} parent=43 // loop_header
              %s290 = sphi 0, %s294
              %p291 = scmp.ge.s32.totalorder %s290, 1
              %s295 = sphi %s3, %s3
              %s296 = sphi [#allocation4], [#allocation4]
            $region47: #{tpu_custom_call.1} parent=43 // loop_header_branch
              %293 = sbr.rel (%p291) target = $region51
            $region48: #{tpu_custom_call.1} parent=43 // loop_body
              %v297 = vld [vmem:[%s295] sm:%s288]
              %298 = vst [vmem:[%s296] sm:%s288] %v297
            $region49: #{tpu_custom_call.1} parent=43 // loop_footer
              %s294 = sadd.s32 1, %s290
            $region50: #{tpu_custom_call.1} parent=43 // loop_footer_branch
              %289 = sbr.rel target = $region46
            $region51: #{tpu_custom_call.1} parent=43 // loop_exit
              _
          $region44: #{tpu_custom_call.1} parent=35 // pred_fallthru
            _
          // Predicated region
          $region67: #{tpu_custom_call.1} parent=35 // pred_check
            _
          $region68: #{tpu_custom_call.1} parent=35 // pred_check_branch
            %354 = sbr.rel (0) target = $region70
          $region69: #{tpu_custom_call.1} parent=35 // pred_region
            %355 = vsyncadd [#allocation6], 2304
          $region70: #{tpu_custom_call.1} parent=35 // pred_fallthru
            _
          %s356 = scalar_lea.sflag [#allocation6], 1
          %p358 = scmp.lt.u32.totalorder 11, 8
          %p359 = pneg %p358
          // Predicated region
          $region71: #{tpu_custom_call.1} parent=35 // pred_check
            _
          $region72: #{tpu_custom_call.1} parent=35 // pred_check_branch
            %361 = sbr.rel (%p358) target = $region74
          $region73: #{tpu_custom_call.1} parent=35 // pred_region
            %s377 = sand.u32 11, 7
            %p378 = scmp.eq.s32.totalorder %s377, 0
            %p379 = pneg %p378
            // Predicated region
            $region86: #{tpu_custom_call.1} parent=73 // pred_check
              _
            $region87: #{tpu_custom_call.1} parent=73 // pred_check_branch
              %381 = sbr.rel (%p378) target = $region89
            $region88: #{tpu_custom_call.1} parent=73 // pred_region
              %s382 = sand.u32 11, 7
              %s383 = ssub.s32 11, %s382
              %s384 = scalar_lea.vmem %s4, %s383
              %s385 = ssub.s32 11, %s382
              %s386 = scalar_lea.vmem [#allocation5], %s385
              loop: start=0, step=1, limit=1
              $region90: #{tpu_custom_call.1} parent=88 // loop_pre_header
                _
              $region91: #{tpu_custom_call.1} parent=88 // loop_header
                %s388 = sphi 0, %s392
                %p389 = scmp.ge.s32.totalorder %s388, 1
                %s393 = sphi %s4, %s4
                %s394 = sphi [#allocation5], [#allocation5]
              $region92: #{tpu_custom_call.1} parent=88 // loop_header_branch
                %391 = sbr.rel (%p389) target = $region96
              $region93: #{tpu_custom_call.1} parent=88 // loop_body
                %v395 = vld [vmem:[%s393] sm:$0xff]
                %396 = vst [vmem:[%s394] sm:$0xff] %v395
              $region94: #{tpu_custom_call.1} parent=88 // loop_footer
                %s392 = sadd.s32 1, %s388
              $region95: #{tpu_custom_call.1} parent=88 // loop_footer_branch
                %387 = sbr.rel target = $region91
              $region96: #{tpu_custom_call.1} parent=88 // loop_exit
                _
              %s397 = sshll.u32 1, %s382
              %s398 = ssub.s32 %s397, 1
              loop: start=0, step=1, limit=1
              $region97: #{tpu_custom_call.1} parent=88 // loop_pre_header
                _
              $region98: #{tpu_custom_call.1} parent=88 // loop_header
                %s400 = sphi 0, %s404
                %p401 = scmp.ge.s32.totalorder %s400, 1
                %s405 = sphi %s384, %s384
                %s406 = sphi %s386, %s386
              $region99: #{tpu_custom_call.1} parent=88 // loop_header_branch
                %403 = sbr.rel (%p401) target = $region103
              $region100: #{tpu_custom_call.1} parent=88 // loop_body
                %v407 = vld [vmem:[%s405] sm:%s398]
                %408 = vst [vmem:[%s406] sm:%s398] %v407
              $region101: #{tpu_custom_call.1} parent=88 // loop_footer
                %s404 = sadd.s32 1, %s400
              $region102: #{tpu_custom_call.1} parent=88 // loop_footer_branch
                %399 = sbr.rel target = $region98
              $region103: #{tpu_custom_call.1} parent=88 // loop_exit
                _
            $region89: #{tpu_custom_call.1} parent=73 // pred_fallthru
              _
          $region74: #{tpu_custom_call.1} parent=35 // pred_fallthru
            _
          // Predicated region
          $region75: #{tpu_custom_call.1} parent=35 // pred_check
            %p362 = pneg %p358
          $region76: #{tpu_custom_call.1} parent=35 // pred_check_branch
            %364 = sbr.rel (%p362) target = $region78
          $region77: #{tpu_custom_call.1} parent=35 // pred_region
            %s365 = sshll.u32 1, 11
            %s366 = ssub.s32 %s365, 1
            loop: start=0, step=1, limit=1
            $region79: #{tpu_custom_call.1} parent=77 // loop_pre_header
              _
            $region80: #{tpu_custom_call.1} parent=77 // loop_header
              %s368 = sphi 0, %s372
              %p369 = scmp.ge.s32.totalorder %s368, 1
              %s373 = sphi %s4, %s4
              %s374 = sphi [#allocation5], [#allocation5]
            $region81: #{tpu_custom_call.1} parent=77 // loop_header_branch
              %371 = sbr.rel (%p369) target = $region85
            $region82: #{tpu_custom_call.1} parent=77 // loop_body
              %v375 = vld [vmem:[%s373] sm:%s366]
              %376 = vst [vmem:[%s374] sm:%s366] %v375
            $region83: #{tpu_custom_call.1} parent=77 // loop_footer
              %s372 = sadd.s32 1, %s368
            $region84: #{tpu_custom_call.1} parent=77 // loop_footer_branch
              %367 = sbr.rel target = $region80
            $region85: #{tpu_custom_call.1} parent=77 // loop_exit
              _
          $region78: #{tpu_custom_call.1} parent=35 // pred_fallthru
            _
          // Predicated region
          $region104: #{tpu_custom_call.1} parent=35 // pred_check
            _
          $region105: #{tpu_custom_call.1} parent=35 // pred_check_branch
            %411 = sbr.rel (0) target = $region107
          $region106: #{tpu_custom_call.1} parent=35 // pred_region
            %412 = vsyncadd %s356, 176
          $region107: #{tpu_custom_call.1} parent=35 // pred_fallthru
            _
          %s413 = smul.u32 4, 36
          %s414 = smul.u32 %s413, 1
          %s415 = sshll.u32 %s414, 4
          %416 = dma.done [#allocation6], %s415
          %s417 = smul.u32 11, 1
          %s418 = sshll.u32 %s417, 4
          %419 = dma.done %s356, %s418
        $region36: #{tpu_custom_call.1} parent=31 // pred_fallthru
          _
        %v420 = vld [vmem:[#allocation4] sm:$0xf]
        %v421 = vld [vmem:[#allocation4 + $0x4] sm:$0xf]
        %v422 = vld [vmem:[#allocation4 + $0x8] sm:$0xf]
        %v423 = vld [vmem:[#allocation4 + $0xc] sm:$0xf]
        %v424 = vld [vmem:[#allocation4 + $0x10] sm:$0xf]
        %v425 = vld [vmem:[#allocation4 + $0x14] sm:$0xf]
        %v426 = vld [vmem:[#allocation4 + $0x18] sm:$0xf]
        %v427 = vld [vmem:[#allocation4 + $0x1c] sm:$0xf]
        %v428 = vld [vmem:[#allocation4 + $0x20] sm:$0xf]
        %v429 = vld [vmem:[#allocation4 + $0x24] sm:$0xf]
        %v430 = vld [vmem:[#allocation4 + $0x28] sm:$0xf]
        %v431 = vld [vmem:[#allocation4 + $0x2c] sm:$0xf]
        %v432 = vld [vmem:[#allocation4 + $0x30] sm:$0xf]
        %v433 = vld [vmem:[#allocation4 + $0x34] sm:$0xf]
        %v434 = vld [vmem:[#allocation4 + $0x38] sm:$0xf]
        %v435 = vld [vmem:[#allocation4 + $0x3c] sm:$0xf]
        %v436 = vld [vmem:[#allocation4 + $0x40] sm:$0xf]
        %v437 = vld [vmem:[#allocation4 + $0x44] sm:$0xf]
        %v438 = vld [vmem:[#allocation4 + $0x48] sm:$0xf]
        %v439 = vld [vmem:[#allocation4 + $0x4c] sm:$0xf]
        %v440 = vld [vmem:[#allocation4 + $0x50] sm:$0xf]
        %v441 = vld [vmem:[#allocation4 + $0x54] sm:$0xf]
        %v442 = vld [vmem:[#allocation4 + $0x58] sm:$0xf]
        %v443 = vld [vmem:[#allocation4 + $0x5c] sm:$0xf]
        %v444 = vld [vmem:[#allocation4 + $0x60] sm:$0xf]
        %v445 = vld [vmem:[#allocation4 + $0x64] sm:$0xf]
        %v446 = vld [vmem:[#allocation4 + $0x68] sm:$0xf]
        %v447 = vld [vmem:[#allocation4 + $0x6c] sm:$0xf]
        %v448 = vld [vmem:[#allocation4 + $0x70] sm:$0xf]
        %v449 = vld [vmem:[#allocation4 + $0x74] sm:$0xf]
        %v450 = vld [vmem:[#allocation4 + $0x78] sm:$0xf]
        %v451 = vld [vmem:[#allocation4 + $0x7c] sm:$0xf]
        %v452 = vld [vmem:[#allocation4 + $0x80] sm:$0xf]
        %v453 = vld [vmem:[#allocation4 + $0x84] sm:$0xf]
        %v454 = vld [vmem:[#allocation4 + $0x88] sm:$0xf]
        %v455 = vld [vmem:[#allocation4 + $0x8c] sm:$0xf]
        %v456 = vld [vmem:[#allocation5] sm:$0x1]
        %v457 = vld [vmem:[#allocation5 + $0x1] sm:$0x1]
        %v458 = vld [vmem:[#allocation5 + $0x2] sm:$0x1]
        %v459 = vld [vmem:[#allocation5 + $0x3] sm:$0x1]
        %v460 = vld [vmem:[#allocation5 + $0x4] sm:$0x1]
        %v461 = vld [vmem:[#allocation5 + $0x5] sm:$0x1]
        %v462 = vld [vmem:[#allocation5 + $0x6] sm:$0x1]
        %v463 = vld [vmem:[#allocation5 + $0x7] sm:$0x1]
        %v464 = vld [vmem:[#allocation5 + $0x8] sm:$0x1]
        %v465 = vld [vmem:[#allocation5 + $0x9] sm:$0x1]
        %v466 = vld [vmem:[#allocation5 + $0xa] sm:$0x1]
        %v467 = vld [vmem:[#allocation2] sm:$0xff]
        %v468 = vld [vmem:[#allocation2 + $0x8] sm:$0xff]
        %v469 = vld [vmem:[#allocation3] sm:$0xff]
        %v470 = vld [vmem:[#allocation3 + $0x8] sm:$0xff]
        %v471 = vld [vmem:[%s248] sm:$0xff]
        %v472 = vld [vmem:[%s248 + $0x8] sm:$0xff]
        %v473 = vpack.c.bf16 %v468, %v467
        %v474 = vlaneseq
        %v475 = vshrl.u32 %v474, 7
        %v476 = vsub.s32 0, %v475
        %v477 = vrot.slane %v458, %v476
        %v482 = vunpack.c.l.b16 %v444
        %v483 = vunpack.c.l.b16 %v445
        %v484 = vunpack.c.l.b16 %v446
        %v485 = vunpack.c.l.b16 %v447
        %v486 = vpack.c.b16 %v483, %v482
        %v487 = vpack.c.b16 %v485, %v484
        %vm490 = vcmask 261120
        %v492 = vsel %vm490, %v473, 0
        %494 = vmatprep.subr.bf16.mxu0 0
        %495 = vmatpush1.bf16.msra.mxu0 0
        %496 = vmatprep.subr.bf16.mxu0 0
        %497 = vmatpush1.bf16.msra.mxu0 0
        %498 = vmatprep.subr.bf16.mxu0 0
        %499 = vmatpush1.bf16.msra.mxu0 0
        %500 = vmatprep.subr.bf16.mxu0 0
        %501 = vmatpush1.bf16.msra.mxu0 0
        %502 = vmatprep.subr.bf16.mxu0 0
        %503 = vmatpush1.bf16.msra.mxu0 0
        %504 = vmatprep.subr.bf16.mxu0 0
        %505 = vmatpush1.bf16.msra.mxu0 0
        %506 = vmatprep.subr.bf16.mxu0 0
        %507 = vmatpush1.bf16.msra.mxu0 %v487
        %508 = vmatprep.subr.bf16.mxu0 0
        %509 = vmatpush1.bf16.msra.mxu0 %v486
        %510 = vmatprep.subr.bf16.mxu0 0
        %511 = vmatpush2.bf16.msra.mxu0 0
        %512 = vmatprep.subr.bf16.mxu0 0
        %513 = vmatpush2.bf16.msra.mxu0 0
        %514 = vmatprep.subr.bf16.mxu0 0
        %515 = vmatpush2.bf16.msra.mxu0 0
        %516 = vmatprep.subr.bf16.mxu0 0
        %517 = vmatpush2.bf16.msra.mxu0 0
        %518 = vmatprep.subr.bf16.mxu0 0
        %519 = vmatpush2.bf16.msra.mxu0 0
        %520 = vmatprep.subr.bf16.mxu0 0
        %521 = vmatpush2.bf16.msra.mxu0 0
        %522 = vmatprep.subr.bf16.mxu0 0
        %523 = vmatpush2.bf16.msra.mxu0 0
        %524 = vmatprep.subr.bf16.mxu0 0
        %525 = vmatpush2.bf16.msra.mxu0 0
        %526 = vmatprep.mubr.bf16.mxu0 0
        %527 = vmatmul.mubr.bf16.gmra.mxu0 %v492
        %v528 = vpop.f32.mrf.mxu0
        %v529 = vadd.f32 %v477, %v528
        %v530 = vpop.f32.mrf.mxu0
        %v531 = vpop.f32.mrf.mxu0
        %v532 = vadd.f32 %v477, %v531
        %v533 = vpop.f32.mrf.mxu0
        %534 = vdwg.mxu0
        %v537 = vcombine.high %v529, %v529
        %v539 = vunpack.c.l.s4 1966171168
        %v540 = vunpack.c.0.s8 %v539
        %v541 = vlaneseq
        %v542 = vshrl.u32 %v541, 7
        %v543 = vsub.s32 %v540, %v542
        %v544 = vrot.slane %v529, %v543
        %v546 = vunpack.c.l.s4 1966171168
        %v547 = vunpack.c.0.s8 %v546
        %v548 = vlaneseq
        %v549 = vshrl.u32 %v548, 7
        %v550 = vsub.s32 %v547, %v549
        %v551 = vrot.slane %v537, %v550
        %v552 = vcombine.high %v544, %v544
        %v553 = vcombine.high %v551, %v551
        %v555 = vunpack.c.l.s4 1966171168
        %v556 = vunpack.c.0.s8 %v555
        %v557 = vlaneseq
        %v558 = vshrl.u32 %v557, 7
        %v559 = vsub.s32 %v556, %v558
        %v560 = vrot.slane %v544, %v559
        %v562 = vunpack.c.l.s4 1966171168
        %v563 = vunpack.c.0.s8 %v562
        %v564 = vlaneseq
        %v565 = vshrl.u32 %v564, 7
        %v566 = vsub.s32 %v563, %v565
        %v567 = vrot.slane %v551, %v566
        %v569 = vunpack.c.l.s4 1966171168
        %v570 = vunpack.c.0.s8 %v569
        %v571 = vlaneseq
        %v572 = vshrl.u32 %v571, 7
        %v573 = vsub.s32 %v570, %v572
        %v574 = vrot.slane %v552, %v573
        %v576 = vunpack.c.l.s4 1966171168
        %v577 = vunpack.c.0.s8 %v576
        %v578 = vlaneseq
        %v579 = vshrl.u32 %v578, 7
        %v580 = vsub.s32 %v577, %v579
        %v581 = vrot.slane %v553, %v580
        %v582 = vcombine.high %v560, %v560
        %v583 = vcombine.high %v567, %v567
        %v584 = vcombine.high %v574, %v574
        %v585 = vcombine.high %v581, %v581
        %v586 = vcombine.high %v532, %v532
        %v588 = vunpack.c.l.s4 1966171168
        %v589 = vunpack.c.0.s8 %v588
        %v590 = vlaneseq
        %v591 = vshrl.u32 %v590, 7
        %v592 = vsub.s32 %v589, %v591
        %v593 = vrot.slane %v532, %v592
        %v595 = vunpack.c.l.s4 1966171168
        %v596 = vunpack.c.0.s8 %v595
        %v597 = vlaneseq
        %v598 = vshrl.u32 %v597, 7
        %v599 = vsub.s32 %v596, %v598
        %v600 = vrot.slane %v586, %v599
        %v601 = vcombine.high %v593, %v593
        %v602 = vcombine.high %v600, %v600
        %v604 = vunpack.c.l.s4 1966171168
        %v605 = vunpack.c.0.s8 %v604
        %v606 = vlaneseq
        %v607 = vshrl.u32 %v606, 7
        %v608 = vsub.s32 %v605, %v607
        %v609 = vrot.slane %v593, %v608
        %v611 = vunpack.c.l.s4 1966171168
        %v612 = vunpack.c.0.s8 %v611
        %v613 = vlaneseq
        %v614 = vshrl.u32 %v613, 7
        %v615 = vsub.s32 %v612, %v614
        %v616 = vrot.slane %v600, %v615
        %v618 = vunpack.c.l.s4 1966171168
        %v619 = vunpack.c.0.s8 %v618
        %v620 = vlaneseq
        %v621 = vshrl.u32 %v620, 7
        %v622 = vsub.s32 %v619, %v621
        %v623 = vrot.slane %v601, %v622
        %v625 = vunpack.c.l.s4 1966171168
        %v626 = vunpack.c.0.s8 %v625
        %v627 = vlaneseq
        %v628 = vshrl.u32 %v627, 7
        %v629 = vsub.s32 %v626, %v628
        %v630 = vrot.slane %v602, %v629
        %v631 = vcombine.high %v609, %v609
        %v632 = vcombine.high %v616, %v616
        %v633 = vcombine.high %v623, %v623
        %v634 = vcombine.high %v630, %v630
        %v635 = vlaneseq
        %v636 = vshrl.u32 %v635, 7
        %v637 = vsub.s32 0, %v636
        %v638 = vrot.slane %v560, %v637
        %v639 = vlaneseq
        %v640 = vshrl.u32 %v639, 7
        %v641 = vsub.s32 0, %v640
        %v642 = vrot.slane %v574, %v641
        %v643 = vlaneseq
        %v644 = vshrl.u32 %v643, 7
        %v645 = vsub.s32 0, %v644
        %v646 = vrot.slane %v582, %v645
        %v647 = vlaneseq
        %v648 = vshrl.u32 %v647, 7
        %v649 = vsub.s32 0, %v648
        %v650 = vrot.slane %v584, %v649
        %v651 = vlaneseq
        %v652 = vshrl.u32 %v651, 7
        %v653 = vsub.s32 0, %v652
        %v654 = vrot.slane %v567, %v653
        %v655 = vlaneseq
        %v656 = vshrl.u32 %v655, 7
        %v657 = vsub.s32 0, %v656
        %v658 = vrot.slane %v581, %v657
        %v659 = vlaneseq
        %v660 = vshrl.u32 %v659, 7
        %v661 = vsub.s32 0, %v660
        %v662 = vrot.slane %v583, %v661
        %v663 = vlaneseq
        %v664 = vshrl.u32 %v663, 7
        %v665 = vsub.s32 0, %v664
        %v666 = vrot.slane %v585, %v665
        %v667 = vlaneseq
        %v668 = vshrl.u32 %v667, 7
        %v669 = vsub.s32 0, %v668
        %v670 = vrot.slane %v609, %v669
        %v671 = vlaneseq
        %v672 = vshrl.u32 %v671, 7
        %v673 = vsub.s32 0, %v672
        %v674 = vrot.slane %v623, %v673
        %v675 = vlaneseq
        %v676 = vshrl.u32 %v675, 7
        %v677 = vsub.s32 0, %v676
        %v678 = vrot.slane %v631, %v677
        %v679 = vlaneseq
        %v680 = vshrl.u32 %v679, 7
        %v681 = vsub.s32 0, %v680
        %v682 = vrot.slane %v633, %v681
        %v683 = vlaneseq
        %v684 = vshrl.u32 %v683, 7
        %v685 = vsub.s32 0, %v684
        %v686 = vrot.slane %v616, %v685
        %v687 = vlaneseq
        %v688 = vshrl.u32 %v687, 7
        %v689 = vsub.s32 0, %v688
        %v690 = vrot.slane %v630, %v689
        %v691 = vlaneseq
        %v692 = vshrl.u32 %v691, 7
        %v693 = vsub.s32 0, %v692
        %v694 = vrot.slane %v632, %v693
        %v695 = vlaneseq
        %v696 = vshrl.u32 %v695, 7
        %v697 = vsub.s32 0, %v696
        %v698 = vrot.slane %v634, %v697
        %v715 = vadd.f32 %v529, %v638
        %v716 = vadd.f32 %v529, %v642
        %v717 = vadd.f32 %v529, %v646
        %v718 = vadd.f32 %v529, %v650
        %v719 = vadd.f32 %v529, %v654
        %v720 = vadd.f32 %v529, %v658
        %v721 = vadd.f32 %v529, %v662
        %v722 = vadd.f32 %v529, %v666
        %v723 = vadd.f32 %v532, %v670
        %v724 = vadd.f32 %v532, %v674
        %v725 = vadd.f32 %v532, %v678
        %v726 = vadd.f32 %v532, %v682
        %v727 = vadd.f32 %v532, %v686
        %v728 = vadd.f32 %v532, %v690
        %v729 = vadd.f32 %v532, %v694
        %v730 = vadd.f32 %v532, %v698
        %v731 = vlaneseq
        %v732 = vshrl.u32 %v731, 7
        %v733 = vsub.s32 0, %v732
        %v734 = vrot.slane %v469, %v733
        %736 = vbcast.lane.b32.xlu0 %v734, 256
        %v737 = vpop.permute.xlu0 %736
        %v738 = vlaneseq
        %v739 = vshrl.u32 %v738, 7
        %v740 = vsub.s32 1, %v739
        %v741 = vrot.slane %v469, %v740
        %743 = vbcast.lane.b32.xlu0 %v741, 256
        %v744 = vpop.permute.xlu0 %743
        %v745 = vlaneseq
        %v746 = vshrl.u32 %v745, 7
        %v747 = vsub.s32 2, %v746
        %v748 = vrot.slane %v469, %v747
        %750 = vbcast.lane.b32.xlu0 %v748, 256
        %v751 = vpop.permute.xlu0 %750
        %v752 = vlaneseq
        %v753 = vshrl.u32 %v752, 7
        %v754 = vsub.s32 3, %v753
        %v755 = vrot.slane %v469, %v754
        %757 = vbcast.lane.b32.xlu0 %v755, 256
        %v758 = vpop.permute.xlu0 %757
        %v759 = vlaneseq
        %v760 = vshrl.u32 %v759, 7
        %v761 = vsub.s32 4, %v760
        %v762 = vrot.slane %v469, %v761
        %764 = vbcast.lane.b32.xlu0 %v762, 256
        %v765 = vpop.permute.xlu0 %764
        %v766 = vlaneseq
        %v767 = vshrl.u32 %v766, 7
        %v768 = vsub.s32 5, %v767
        %v769 = vrot.slane %v469, %v768
        %771 = vbcast.lane.b32.xlu0 %v769, 256
        %v772 = vpop.permute.xlu0 %771
        %v773 = vlaneseq
        %v774 = vshrl.u32 %v773, 7
        %v775 = vsub.s32 6, %v774
        %v776 = vrot.slane %v469, %v775
        %778 = vbcast.lane.b32.xlu0 %v776, 256
        %v779 = vpop.permute.xlu0 %778
        %v780 = vlaneseq
        %v781 = vshrl.u32 %v780, 7
        %v782 = vsub.s32 7, %v781
        %v783 = vrot.slane %v469, %v782
        %785 = vbcast.lane.b32.xlu0 %v783, 256
        %v786 = vpop.permute.xlu0 %785
        %v787 = vlaneseq
        %v788 = vshrl.u32 %v787, 7
        %v789 = vsub.s32 0, %v788
        %v790 = vrot.slane %v470, %v789
        %792 = vbcast.lane.b32.xlu0 %v790, 256
        %v793 = vpop.permute.xlu0 %792
        %v794 = vlaneseq
        %v795 = vshrl.u32 %v794, 7
        %v796 = vsub.s32 1, %v795
        %v797 = vrot.slane %v470, %v796
        %799 = vbcast.lane.b32.xlu0 %v797, 256
        %v800 = vpop.permute.xlu0 %799
        %v801 = vlaneseq
        %v802 = vshrl.u32 %v801, 7
        %v803 = vsub.s32 2, %v802
        %v804 = vrot.slane %v470, %v803
        %806 = vbcast.lane.b32.xlu0 %v804, 256
        %v807 = vpop.permute.xlu0 %806
        %v808 = vlaneseq
        %v809 = vshrl.u32 %v808, 7
        %v810 = vsub.s32 3, %v809
        %v811 = vrot.slane %v470, %v810
        %813 = vbcast.lane.b32.xlu0 %v811, 256
        %v814 = vpop.permute.xlu0 %813
        %v815 = vlaneseq
        %v816 = vshrl.u32 %v815, 7
        %v817 = vsub.s32 4, %v816
        %v818 = vrot.slane %v470, %v817
        %820 = vbcast.lane.b32.xlu0 %v818, 256
        %v821 = vpop.permute.xlu0 %820
        %v822 = vlaneseq
        %v823 = vshrl.u32 %v822, 7
        %v824 = vsub.s32 5, %v823
        %v825 = vrot.slane %v470, %v824
        %827 = vbcast.lane.b32.xlu0 %v825, 256
        %v828 = vpop.permute.xlu0 %827
        %v829 = vlaneseq
        %v830 = vshrl.u32 %v829, 7
        %v831 = vsub.s32 6, %v830
        %v832 = vrot.slane %v470, %v831
        %834 = vbcast.lane.b32.xlu0 %v832, 256
        %v835 = vpop.permute.xlu0 %834
        %v836 = vlaneseq
        %v837 = vshrl.u32 %v836, 7
        %v838 = vsub.s32 7, %v837
        %v839 = vrot.slane %v470, %v838
        %841 = vbcast.lane.b32.xlu0 %v839, 256
        %v842 = vpop.permute.xlu0 %841
        %v843 = vlaneseq
        %v844 = vshrl.u32 %v843, 7
        %v845 = vsub.s32 0, %v844
        %v846 = vrot.slane %v459, %v845
        %v847 = vmul.f32 %v737, %v846
        %v848 = vmul.f32 %v744, %v846
        %v849 = vmul.f32 %v751, %v846
        %v850 = vmul.f32 %v758, %v846
        %v851 = vmul.f32 %v765, %v846
        %v852 = vmul.f32 %v772, %v846
        %v853 = vmul.f32 %v779, %v846
        %v854 = vmul.f32 %v786, %v846
        %v855 = vmul.f32 %v793, %v846
        %v856 = vmul.f32 %v800, %v846
        %v857 = vmul.f32 %v807, %v846
        %v858 = vmul.f32 %v814, %v846
        %v859 = vmul.f32 %v821, %v846
        %v860 = vmul.f32 %v828, %v846
        %v861 = vmul.f32 %v835, %v846
        %v862 = vmul.f32 %v842, %v846
        %v863 = vadd.f32 %v715, %v847
        %v864 = vadd.f32 %v716, %v848
        %v865 = vadd.f32 %v717, %v849
        %v866 = vadd.f32 %v718, %v850
        %v867 = vadd.f32 %v719, %v851
        %v868 = vadd.f32 %v720, %v852
        %v869 = vadd.f32 %v721, %v853
        %v870 = vadd.f32 %v722, %v854
        %v871 = vadd.f32 %v723, %v855
        %v872 = vadd.f32 %v724, %v856
        %v873 = vadd.f32 %v725, %v857
        %v874 = vadd.f32 %v726, %v858
        %v875 = vadd.f32 %v727, %v859
        %v876 = vadd.f32 %v728, %v860
        %v877 = vadd.f32 %v729, %v861
        %v878 = vadd.f32 %v730, %v862
        %v879 = vlaneseq
        %v880 = vshrl.u32 %v879, 7
        %v881 = vsub.s32 0, %v880
        %v882 = vrot.slane %v460, %v881
        %v883 = vadd.f32 %v863, %v882
        %v884 = vadd.f32 %v864, %v882
        %v885 = vadd.f32 %v865, %v882
        %v886 = vadd.f32 %v866, %v882
        %v887 = vadd.f32 %v867, %v882
        %v888 = vadd.f32 %v868, %v882
        %v889 = vadd.f32 %v869, %v882
        %v890 = vadd.f32 %v870, %v882
        %v891 = vadd.f32 %v871, %v882
        %v892 = vadd.f32 %v872, %v882
        %v893 = vadd.f32 %v873, %v882
        %v894 = vadd.f32 %v874, %v882
        %v895 = vadd.f32 %v875, %v882
        %v896 = vadd.f32 %v876, %v882
        %v897 = vadd.f32 %v877, %v882
        %v898 = vadd.f32 %v878, %v882
        %v899 = vmax.f32 %v883, 0.0
        %v900 = vmax.f32 %v884, 0.0
        %v901 = vmax.f32 %v885, 0.0
        %v902 = vmax.f32 %v886, 0.0
        %v903 = vmax.f32 %v887, 0.0
        %v904 = vmax.f32 %v888, 0.0
        %v905 = vmax.f32 %v889, 0.0
        %v906 = vmax.f32 %v890, 0.0
        %v907 = vmax.f32 %v891, 0.0
        %v908 = vmax.f32 %v892, 0.0
        %v909 = vmax.f32 %v893, 0.0
        %v910 = vmax.f32 %v894, 0.0
        %v911 = vmax.f32 %v895, 0.0
        %v912 = vmax.f32 %v896, 0.0
        %v913 = vmax.f32 %v897, 0.0
        %v914 = vmax.f32 %v898, 0.0
        %v915 = vlaneseq
        %v916 = vshrl.u32 %v915, 7
        %v917 = vsub.s32 0, %v916
        %v918 = vrot.slane %v465, %v917
        %v919 = vmul.f32 %v899, %v918
        %v920 = vmul.f32 %v900, %v918
        %v921 = vmul.f32 %v901, %v918
        %v922 = vmul.f32 %v902, %v918
        %v923 = vmul.f32 %v903, %v918
        %v924 = vmul.f32 %v904, %v918
        %v925 = vmul.f32 %v905, %v918
        %v926 = vmul.f32 %v906, %v918
        %v927 = vmul.f32 %v907, %v918
        %v928 = vmul.f32 %v908, %v918
        %v929 = vmul.f32 %v909, %v918
        %v930 = vmul.f32 %v910, %v918
        %v931 = vmul.f32 %v911, %v918
        %v932 = vmul.f32 %v912, %v918
        %v933 = vmul.f32 %v913, %v918
        %v934 = vmul.f32 %v914, %v918
        %v935 = vsel %vm490, %v919, 0.0
        %936 = vadd.xlane.f32.xlu0 %v935
        %v937 = vpop.xlane.xlu0 %936
        %v938 = vsel %vm490, %v920, 0.0
        %939 = vadd.xlane.f32.xlu0 %v938
        %v940 = vpop.xlane.xlu0 %939
        %v941 = vsel %vm490, %v921, 0.0
        %942 = vadd.xlane.f32.xlu0 %v941
        %v943 = vpop.xlane.xlu0 %942
        %v944 = vsel %vm490, %v922, 0.0
        %945 = vadd.xlane.f32.xlu0 %v944
        %v946 = vpop.xlane.xlu0 %945
        %v947 = vsel %vm490, %v923, 0.0
        %948 = vadd.xlane.f32.xlu0 %v947
        %v949 = vpop.xlane.xlu0 %948
        %v950 = vsel %vm490, %v924, 0.0
        %951 = vadd.xlane.f32.xlu0 %v950
        %v952 = vpop.xlane.xlu0 %951
        %v953 = vsel %vm490, %v925, 0.0
        %954 = vadd.xlane.f32.xlu0 %v953
        %v955 = vpop.xlane.xlu0 %954
        %v956 = vsel %vm490, %v926, 0.0
        %957 = vadd.xlane.f32.xlu0 %v956
        %v958 = vpop.xlane.xlu0 %957
        %v959 = vsel %vm490, %v927, 0.0
        %960 = vadd.xlane.f32.xlu0 %v959
        %v961 = vpop.xlane.xlu0 %960
        %v962 = vsel %vm490, %v928, 0.0
        %963 = vadd.xlane.f32.xlu0 %v962
        %v964 = vpop.xlane.xlu0 %963
        %v965 = vsel %vm490, %v929, 0.0
        %966 = vadd.xlane.f32.xlu0 %v965
        %v967 = vpop.xlane.xlu0 %966
        %v968 = vsel %vm490, %v930, 0.0
        %969 = vadd.xlane.f32.xlu0 %v968
        %v970 = vpop.xlane.xlu0 %969
        %v971 = vsel %vm490, %v931, 0.0
        %972 = vadd.xlane.f32.xlu0 %v971
        %v973 = vpop.xlane.xlu0 %972
        %v974 = vsel %vm490, %v932, 0.0
        %975 = vadd.xlane.f32.xlu0 %v974
        %v976 = vpop.xlane.xlu0 %975
        %v977 = vsel %vm490, %v933, 0.0
        %978 = vadd.xlane.f32.xlu0 %v977
        %v979 = vpop.xlane.xlu0 %978
        %v980 = vsel %vm490, %v934, 0.0
        %981 = vadd.xlane.f32.xlu0 %v980
        %v982 = vpop.xlane.xlu0 %981
        %s984 = vtos %v466
        %v985 = vstv %s984
        %v987 = vadd.f32 %v937, %v985
        %v988 = vadd.f32 %v940, %v985
        %v989 = vadd.f32 %v943, %v985
        %v990 = vadd.f32 %v946, %v985
        %v991 = vadd.f32 %v949, %v985
        %v992 = vadd.f32 %v952, %v985
        %v993 = vadd.f32 %v955, %v985
        %v994 = vadd.f32 %v958, %v985
        %v995 = vadd.f32 %v961, %v985
        %v996 = vadd.f32 %v964, %v985
        %v997 = vadd.f32 %v967, %v985
        %v998 = vadd.f32 %v970, %v985
        %v999 = vadd.f32 %v973, %v985
        %v1000 = vadd.f32 %v976, %v985
        %v1001 = vadd.f32 %v979, %v985
        %v1002 = vadd.f32 %v982, %v985
        %v1003 = vsub.f32 0.0, %v987
        %v1004 = vsub.f32 0.0, %v988
        %v1005 = vsub.f32 0.0, %v989
        %v1006 = vsub.f32 0.0, %v990
        %v1007 = vsub.f32 0.0, %v991
        %v1008 = vsub.f32 0.0, %v992
        %v1009 = vsub.f32 0.0, %v993
        %v1010 = vsub.f32 0.0, %v994
        %v1011 = vsub.f32 0.0, %v995
        %v1012 = vsub.f32 0.0, %v996
        %v1013 = vsub.f32 0.0, %v997
        %v1014 = vsub.f32 0.0, %v998
        %v1015 = vsub.f32 0.0, %v999
        %v1016 = vsub.f32 0.0, %v1000
        %v1017 = vsub.f32 0.0, %v1001
        %v1018 = vsub.f32 0.0, %v1002
        %v1019 = vmul.f32 %v1003, 1.442695
        %v1020 = vpow.pop %v1019
        %v1021 = vmul.f32 %v1004, 1.442695
        %v1022 = vpow.pop %v1021
        %v1023 = vmul.f32 %v1005, 1.442695
        %v1024 = vpow.pop %v1023
        %v1025 = vmul.f32 %v1006, 1.442695
        %v1026 = vpow.pop %v1025
        %v1027 = vmul.f32 %v1007, 1.442695
        %v1028 = vpow.pop %v1027
        %v1029 = vmul.f32 %v1008, 1.442695
        %v1030 = vpow.pop %v1029
        %v1031 = vmul.f32 %v1009, 1.442695
        %v1032 = vpow.pop %v1031
        %v1033 = vmul.f32 %v1010, 1.442695
        %v1034 = vpow.pop %v1033
        %v1035 = vmul.f32 %v1011, 1.442695
        %v1036 = vpow.pop %v1035
        %v1037 = vmul.f32 %v1012, 1.442695
        %v1038 = vpow.pop %v1037
        %v1039 = vmul.f32 %v1013, 1.442695
        %v1040 = vpow.pop %v1039
        %v1041 = vmul.f32 %v1014, 1.442695
        %v1042 = vpow.pop %v1041
        %v1043 = vmul.f32 %v1015, 1.442695
        %v1044 = vpow.pop %v1043
        %v1045 = vmul.f32 %v1016, 1.442695
        %v1046 = vpow.pop %v1045
        %v1047 = vmul.f32 %v1017, 1.442695
        %v1048 = vpow.pop %v1047
        %v1049 = vmul.f32 %v1018, 1.442695
        %v1050 = vpow.pop %v1049
        %v1051 = vadd.f32 %v1020, 1.0
        %v1052 = vadd.f32 %v1022, 1.0
        %v1053 = vadd.f32 %v1024, 1.0
        %v1054 = vadd.f32 %v1026, 1.0
        %v1055 = vadd.f32 %v1028, 1.0
        %v1056 = vadd.f32 %v1030, 1.0
        %v1057 = vadd.f32 %v1032, 1.0
        %v1058 = vadd.f32 %v1034, 1.0
        %v1059 = vadd.f32 %v1036, 1.0
        %v1060 = vadd.f32 %v1038, 1.0
        %v1061 = vadd.f32 %v1040, 1.0
        %v1062 = vadd.f32 %v1042, 1.0
        %v1063 = vadd.f32 %v1044, 1.0
        %v1064 = vadd.f32 %v1046, 1.0
        %v1065 = vadd.f32 %v1048, 1.0
        %v1066 = vadd.f32 %v1050, 1.0
        %v1067 = vrcp.pop %v1051
        %v1068 = vmul.f32 1.0, %v1067
        %v1069 = vrcp.pop %v1052
        %v1070 = vmul.f32 1.0, %v1069
        %v1071 = vrcp.pop %v1053
        %v1072 = vmul.f32 1.0, %v1071
        %v1073 = vrcp.pop %v1054
        %v1074 = vmul.f32 1.0, %v1073
        %v1075 = vrcp.pop %v1055
        %v1076 = vmul.f32 1.0, %v1075
        %v1077 = vrcp.pop %v1056
        %v1078 = vmul.f32 1.0, %v1077
        %v1079 = vrcp.pop %v1057
        %v1080 = vmul.f32 1.0, %v1079
        %v1081 = vrcp.pop %v1058
        %v1082 = vmul.f32 1.0, %v1081
        %v1083 = vrcp.pop %v1059
        %v1084 = vmul.f32 1.0, %v1083
        %v1085 = vrcp.pop %v1060
        %v1086 = vmul.f32 1.0, %v1085
        %v1087 = vrcp.pop %v1061
        %v1088 = vmul.f32 1.0, %v1087
        %v1089 = vrcp.pop %v1062
        %v1090 = vmul.f32 1.0, %v1089
        %v1091 = vrcp.pop %v1063
        %v1092 = vmul.f32 1.0, %v1091
        %v1093 = vrcp.pop %v1064
        %v1094 = vmul.f32 1.0, %v1093
        %v1095 = vrcp.pop %v1065
        %v1096 = vmul.f32 1.0, %v1095
        %v1097 = vrcp.pop %v1066
        %v1098 = vmul.f32 1.0, %v1097
        %v1107 = vlaneseq
        %v1108 = vand.u32 %v1107, 127
        %v1109 = vlaneseq
        %v1110 = vshrl.u32 %v1109, 7
        %v1111 = vsub.s32 %v1108, %v1110
        %v1112 = vrot.slane %v1068, %v1111
        %v1113 = vlaneseq
        %v1114 = vshrl.u32 %v1113, 7
        %v1115 = vsub.s32 %v1108, %v1114
        %v1116 = vrot.slane %v1070, %v1115
        %v1117 = vlaneseq
        %v1118 = vshrl.u32 %v1117, 7
        %v1119 = vsub.s32 %v1108, %v1118
        %v1120 = vrot.slane %v1072, %v1119
        %v1121 = vlaneseq
        %v1122 = vshrl.u32 %v1121, 7
        %v1123 = vsub.s32 %v1108, %v1122
        %v1124 = vrot.slane %v1074, %v1123
        %v1125 = vlaneseq
        %v1126 = vshrl.u32 %v1125, 7
        %v1127 = vsub.s32 %v1108, %v1126
        %v1128 = vrot.slane %v1076, %v1127
        %v1129 = vlaneseq
        %v1130 = vshrl.u32 %v1129, 7
        %v1131 = vsub.s32 %v1108, %v1130
        %v1132 = vrot.slane %v1078, %v1131
        %v1133 = vlaneseq
        %v1134 = vshrl.u32 %v1133, 7
        %v1135 = vsub.s32 %v1108, %v1134
        %v1136 = vrot.slane %v1080, %v1135
        %v1137 = vlaneseq
        %v1138 = vshrl.u32 %v1137, 7
        %v1139 = vsub.s32 %v1108, %v1138
        %v1140 = vrot.slane %v1082, %v1139
        %vm1141 = vcmask 1041409
        %v1142 = vsel %vm1141, %v1116, %v1112
        %vm1143 = vcmask 1042434
        %v1144 = vsel %vm1143, %v1120, %v1142
        %vm1145 = vcmask 1043459
        %v1146 = vsel %vm1145, %v1124, %v1144
        %vm1147 = vcmask 1044484
        %v1148 = vsel %vm1147, %v1128, %v1146
        %vm1149 = vcmask 1045509
        %v1150 = vsel %vm1149, %v1132, %v1148
        %vm1151 = vcmask 1046534
        %v1152 = vsel %vm1151, %v1136, %v1150
        %vm1153 = vcmask 1047559
        %v1154 = vsel %vm1153, %v1140, %v1152
        %1156 = vxpose.xlu0.b32.start [1/16] %v1154, 128
        %1157 = vxpose.xlu0.b32.cont [2/16] 0.0, 128
        %1158 = vxpose.xlu0.b32.cont [3/16] 0.0, 128
        %1159 = vxpose.xlu0.b32.cont [4/16] 0.0, 128
        %1160 = vxpose.xlu0.b32.cont [5/16] 0.0, 128
        %1161 = vxpose.xlu0.b32.cont [6/16] 0.0, 128
        %1162 = vxpose.xlu0.b32.cont [7/16] 0.0, 128
        %1163 = vxpose.xlu0.b32.cont [8/16] 0.0, 128
        %1164 = vxpose.xlu0.b32.cont [9/16] 0.0, 128
        %1165 = vxpose.xlu0.b32.cont [10/16] 0.0, 128
        %1166 = vxpose.xlu0.b32.cont [11/16] 0.0, 128
        %1167 = vxpose.xlu0.b32.cont [12/16] 0.0, 128
        %1168 = vxpose.xlu0.b32.cont [13/16] 0.0, 128
        %1169 = vxpose.xlu0.b32.cont [14/16] 0.0, 128
        %1170 = vxpose.xlu0.b32.cont [15/16] 0.0, 128
        %1171 = vxpose.xlu0.b32.end [16/16] 0.0, 128
        %v1172 = vpop.trf.xlu0
        %v1173 = vpop.trf.xlu0
        %v1174 = vpop.trf.xlu0
        %v1175 = vpop.trf.xlu0
        %v1176 = vpop.trf.xlu0
        %v1177 = vpop.trf.xlu0
        %v1178 = vpop.trf.xlu0
        %v1179 = vpop.trf.xlu0
        %v1180 = vpop.trf.xlu0
        %v1181 = vpop.trf.xlu0
        %v1182 = vpop.trf.xlu0
        %v1183 = vpop.trf.xlu0
        %v1184 = vpop.trf.xlu0
        %v1185 = vpop.trf.xlu0
        %v1186 = vpop.trf.xlu0
        %v1187 = vpop.trf.xlu0
        %vm1188 = vcmask 64512
        %v1190 = vsel %vm1188, %v1172, 0
        %1192 = vmatprep.subr.mxu0 0.0
        %1193 = vmatpush1.msra.mxu0 0.0
        %1194 = vmatprep.subr.mxu0 0.0
        %1195 = vmatpush1.msra.mxu0 0.0
        %1196 = vmatprep.subr.mxu0 0.0
        %1197 = vmatpush1.msra.mxu0 0.0
        %1198 = vmatprep.subr.mxu0 0.0
        %1199 = vmatpush1.msra.mxu0 0.0
        %1200 = vmatprep.subr.mxu0 0.0
        %1201 = vmatpush1.msra.mxu0 0.0
        %1202 = vmatprep.subr.mxu0 0.0
        %1203 = vmatpush1.msra.mxu0 0.0
        %1204 = vmatprep.subr.mxu0 0.0
        %1205 = vmatpush1.msra.mxu0 0.0
        %1206 = vmatprep.subr.mxu0 0.0
        %1207 = vmatpush1.msra.mxu0 0.0
        %1208 = vmatprep.subr.mxu0 0.0
        %1209 = vmatpush1.msra.mxu0 0.0
        %1210 = vmatprep.subr.mxu0 0.0
        %1211 = vmatpush1.msra.mxu0 0.0
        %1212 = vmatprep.subr.mxu0 0.0
        %1213 = vmatpush1.msra.mxu0 0.0
        %1214 = vmatprep.subr.mxu0 0.0
        %1215 = vmatpush1.msra.mxu0 0.0
        %1216 = vmatprep.subr.mxu0 0.0
        %1217 = vmatpush1.msra.mxu0 0.0
        %1218 = vmatprep.subr.mxu0 0.0
        %1219 = vmatpush1.msra.mxu0 0.0
        %1220 = vmatprep.subr.mxu0 0.0
        %1221 = vmatpush1.msra.mxu0 0.0
        %1222 = vmatprep.subr.mxu0 0.0
        %1223 = vmatpush1.msra.mxu0 %v467
        %1224 = vmatprep.subr.mxu0 0.0
        %1225 = vmatpush2.msra.mxu0 0.0
        %1226 = vmatprep.subr.mxu0 0.0
        %1227 = vmatpush2.msra.mxu0 0.0
        %1228 = vmatprep.subr.mxu0 0.0
        %1229 = vmatpush2.msra.mxu0 0.0
        %1230 = vmatprep.subr.mxu0 0.0
        %1231 = vmatpush2.msra.mxu0 0.0
        %1232 = vmatprep.subr.mxu0 0.0
        %1233 = vmatpush2.msra.mxu0 0.0
        %1234 = vmatprep.subr.mxu0 0.0
        %1235 = vmatpush2.msra.mxu0 0.0
        %1236 = vmatprep.subr.mxu0 0.0
        %1237 = vmatpush2.msra.mxu0 0.0
        %1238 = vmatprep.subr.mxu0 0.0
        %1239 = vmatpush2.msra.mxu0 0.0
        %1240 = vmatprep.subr.mxu0 0.0
        %1241 = vmatpush2.msra.mxu0 0.0
        %1242 = vmatprep.subr.mxu0 0.0
        %1243 = vmatpush2.msra.mxu0 0.0
        %1244 = vmatprep.subr.mxu0 0.0
        %1245 = vmatpush2.msra.mxu0 0.0
        %1246 = vmatprep.subr.mxu0 0.0
        %1247 = vmatpush2.msra.mxu0 0.0
        %1248 = vmatprep.subr.mxu0 0.0
        %1249 = vmatpush2.msra.mxu0 0.0
        %1250 = vmatprep.subr.mxu0 0.0
        %1251 = vmatpush2.msra.mxu0 0.0
        %1252 = vmatprep.subr.mxu0 0.0
        %1253 = vmatpush2.msra.mxu0 0.0
        %1254 = vmatprep.subr.mxu0 0.0
        %1255 = vmatpush2.msra.mxu0 0.0
        %1256 = vmatprep.mubr.f32.mxu0 0.0
        %1257 = vmatmul.mubr.f32.gmra.mxu0 %v1190
        %v1258 = vpop.f32.mrf.mxu0
        %v1259 = vadd.f32 0.0, %v1258
        %v1260 = vpop.f32.mrf.mxu0
        %1261 = vdwg.mxu0
        %v1270 = vlaneseq
        %v1271 = vshrl.u32 %v1270, 7
        %v1272 = vsub.s32 %v1108, %v1271
        %v1273 = vrot.slane %v1084, %v1272
        %v1274 = vlaneseq
        %v1275 = vshrl.u32 %v1274, 7
        %v1276 = vsub.s32 %v1108, %v1275
        %v1277 = vrot.slane %v1086, %v1276
        %v1278 = vlaneseq
        %v1279 = vshrl.u32 %v1278, 7
        %v1280 = vsub.s32 %v1108, %v1279
        %v1281 = vrot.slane %v1088, %v1280
        %v1282 = vlaneseq
        %v1283 = vshrl.u32 %v1282, 7
        %v1284 = vsub.s32 %v1108, %v1283
        %v1285 = vrot.slane %v1090, %v1284
        %v1286 = vlaneseq
        %v1287 = vshrl.u32 %v1286, 7
        %v1288 = vsub.s32 %v1108, %v1287
        %v1289 = vrot.slane %v1092, %v1288
        %v1290 = vlaneseq
        %v1291 = vshrl.u32 %v1290, 7
        %v1292 = vsub.s32 %v1108, %v1291
        %v1293 = vrot.slane %v1094, %v1292
        %v1294 = vlaneseq
        %v1295 = vshrl.u32 %v1294, 7
        %v1296 = vsub.s32 %v1108, %v1295
        %v1297 = vrot.slane %v1096, %v1296
        %v1298 = vlaneseq
        %v1299 = vshrl.u32 %v1298, 7
        %v1300 = vsub.s32 %v1108, %v1299
        %v1301 = vrot.slane %v1098, %v1300
        %v1302 = vsel %vm1141, %v1277, %v1273
        %v1303 = vsel %vm1143, %v1281, %v1302
        %v1304 = vsel %vm1145, %v1285, %v1303
        %v1305 = vsel %vm1147, %v1289, %v1304
        %v1306 = vsel %vm1149, %v1293, %v1305
        %v1307 = vsel %vm1151, %v1297, %v1306
        %v1308 = vsel %vm1153, %v1301, %v1307
        %1310 = vxpose.xlu0.b32.start [1/16] %v1308, 128
        %1311 = vxpose.xlu0.b32.cont [2/16] 0.0, 128
        %1312 = vxpose.xlu0.b32.cont [3/16] 0.0, 128
        %1313 = vxpose.xlu0.b32.cont [4/16] 0.0, 128
        %1314 = vxpose.xlu0.b32.cont [5/16] 0.0, 128
        %1315 = vxpose.xlu0.b32.cont [6/16] 0.0, 128
        %1316 = vxpose.xlu0.b32.cont [7/16] 0.0, 128
        %1317 = vxpose.xlu0.b32.cont [8/16] 0.0, 128
        %1318 = vxpose.xlu0.b32.cont [9/16] 0.0, 128
        %1319 = vxpose.xlu0.b32.cont [10/16] 0.0, 128
        %1320 = vxpose.xlu0.b32.cont [11/16] 0.0, 128
        %1321 = vxpose.xlu0.b32.cont [12/16] 0.0, 128
        %1322 = vxpose.xlu0.b32.cont [13/16] 0.0, 128
        %1323 = vxpose.xlu0.b32.cont [14/16] 0.0, 128
        %1324 = vxpose.xlu0.b32.cont [15/16] 0.0, 128
        %1325 = vxpose.xlu0.b32.end [16/16] 0.0, 128
        %v1326 = vpop.trf.xlu0
        %v1327 = vpop.trf.xlu0
        %v1328 = vpop.trf.xlu0
        %v1329 = vpop.trf.xlu0
        %v1330 = vpop.trf.xlu0
        %v1331 = vpop.trf.xlu0
        %v1332 = vpop.trf.xlu0
        %v1333 = vpop.trf.xlu0
        %v1334 = vpop.trf.xlu0
        %v1335 = vpop.trf.xlu0
        %v1336 = vpop.trf.xlu0
        %v1337 = vpop.trf.xlu0
        %v1338 = vpop.trf.xlu0
        %v1339 = vpop.trf.xlu0
        %v1340 = vpop.trf.xlu0
        %v1341 = vpop.trf.xlu0
        %v1343 = vsel %vm1188, %v1326, 0
        %1345 = vmatprep.subr.mxu0 0.0
        %1346 = vmatpush1.msra.mxu0 0.0
        %1347 = vmatprep.subr.mxu0 0.0
        %1348 = vmatpush1.msra.mxu0 0.0
        %1349 = vmatprep.subr.mxu0 0.0
        %1350 = vmatpush1.msra.mxu0 0.0
        %1351 = vmatprep.subr.mxu0 0.0
        %1352 = vmatpush1.msra.mxu0 0.0
        %1353 = vmatprep.subr.mxu0 0.0
        %1354 = vmatpush1.msra.mxu0 0.0
        %1355 = vmatprep.subr.mxu0 0.0
        %1356 = vmatpush1.msra.mxu0 0.0
        %1357 = vmatprep.subr.mxu0 0.0
        %1358 = vmatpush1.msra.mxu0 0.0
        %1359 = vmatprep.subr.mxu0 0.0
        %1360 = vmatpush1.msra.mxu0 0.0
        %1361 = vmatprep.subr.mxu0 0.0
        %1362 = vmatpush1.msra.mxu0 0.0
        %1363 = vmatprep.subr.mxu0 0.0
        %1364 = vmatpush1.msra.mxu0 0.0
        %1365 = vmatprep.subr.mxu0 0.0
        %1366 = vmatpush1.msra.mxu0 0.0
        %1367 = vmatprep.subr.mxu0 0.0
        %1368 = vmatpush1.msra.mxu0 0.0
        %1369 = vmatprep.subr.mxu0 0.0
        %1370 = vmatpush1.msra.mxu0 0.0
        %1371 = vmatprep.subr.mxu0 0.0
        %1372 = vmatpush1.msra.mxu0 0.0
        %1373 = vmatprep.subr.mxu0 0.0
        %1374 = vmatpush1.msra.mxu0 0.0
        %1375 = vmatprep.subr.mxu0 0.0
        %1376 = vmatpush1.msra.mxu0 %v468
        %1377 = vmatprep.subr.mxu0 0.0
        %1378 = vmatpush2.msra.mxu0 0.0
        %1379 = vmatprep.subr.mxu0 0.0
        %1380 = vmatpush2.msra.mxu0 0.0
        %1381 = vmatprep.subr.mxu0 0.0
        %1382 = vmatpush2.msra.mxu0 0.0
        %1383 = vmatprep.subr.mxu0 0.0
        %1384 = vmatpush2.msra.mxu0 0.0
        %1385 = vmatprep.subr.mxu0 0.0
        %1386 = vmatpush2.msra.mxu0 0.0
        %1387 = vmatprep.subr.mxu0 0.0
        %1388 = vmatpush2.msra.mxu0 0.0
        %1389 = vmatprep.subr.mxu0 0.0
        %1390 = vmatpush2.msra.mxu0 0.0
        %1391 = vmatprep.subr.mxu0 0.0
        %1392 = vmatpush2.msra.mxu0 0.0
        %1393 = vmatprep.subr.mxu0 0.0
        %1394 = vmatpush2.msra.mxu0 0.0
        %1395 = vmatprep.subr.mxu0 0.0
        %1396 = vmatpush2.msra.mxu0 0.0
        %1397 = vmatprep.subr.mxu0 0.0
        %1398 = vmatpush2.msra.mxu0 0.0
        %1399 = vmatprep.subr.mxu0 0.0
        %1400 = vmatpush2.msra.mxu0 0.0
        %1401 = vmatprep.subr.mxu0 0.0
        %1402 = vmatpush2.msra.mxu0 0.0
        %1403 = vmatprep.subr.mxu0 0.0
        %1404 = vmatpush2.msra.mxu0 0.0
        %1405 = vmatprep.subr.mxu0 0.0
        %1406 = vmatpush2.msra.mxu0 0.0
        %1407 = vmatprep.subr.mxu0 0.0
        %1408 = vmatpush2.msra.mxu0 0.0
        %1409 = vmatprep.mubr.f32.mxu0 0.0
        %1410 = vmatmul.mubr.f32.gmra.mxu0 %v1343
        %v1411 = vpop.f32.mrf.mxu0
        %v1412 = vadd.f32 0.0, %v1411
        %v1413 = vpop.f32.mrf.mxu0
        %1414 = vdwg.mxu0
        %1417 = vrot.lane.b32.xlu0 %v467, 32
        %v1418 = vpop.permute.xlu0 %1417
        %1419 = vrot.lane.b32.xlu0 %v468, 32
        %v1420 = vpop.permute.xlu0 %1419
        %1425 = vrot.lane.b32.xlu0 %v1259, 64
        %v1426 = vpop.permute.xlu0 %1425
        %1427 = vrot.lane.b32.xlu0 %v1412, 64
        %v1428 = vpop.permute.xlu0 %1427
        %v1431 = vsel %vm490, %v471, %v1418
        %v1432 = vsel %vm490, %v472, %v1420
        %vm1433 = vcmask 523264
        %v1434 = vsel %vm1433, %v1431, %v1426
        %v1435 = vsel %vm1433, %v1432, %v1428
        %vm1436 = vcmask 785408
        %v1437 = vsel %vm1436, %v1434, 0.0
        %1438 = vadd.xlane.f32.xlu0 %v1437
        %v1439 = vpop.xlane.xlu0 %1438
        %v1440 = vsel %vm1436, %v1435, 0.0
        %1441 = vadd.xlane.f32.xlu0 %v1440
        %v1442 = vpop.xlane.xlu0 %1441
        %v1443 = vrcp.pop 96.0
        %v1444 = vmul.f32 %v1439, %v1443
        %v1445 = vmul.f32 %v1442, %v1443
        %v1446 = vsub.f32 %v1434, %v1444
        %v1447 = vsub.f32 %v1435, %v1445
        %v1448 = vmul.f32 %v1446, %v1446
        %v1449 = vmul.f32 %v1447, %v1447
        %v1450 = vsel %vm1436, %v1448, 0.0
        %1451 = vadd.xlane.f32.xlu0 %v1450
        %v1452 = vpop.xlane.xlu0 %1451
        %v1453 = vsel %vm1436, %v1449, 0.0
        %1454 = vadd.xlane.f32.xlu0 %v1453
        %v1455 = vpop.xlane.xlu0 %1454
        %v1456 = vmul.f32 %v1452, %v1443
        %v1457 = vmul.f32 %v1455, %v1443
        %v1458 = vadd.f32 %v1456, 1e-05
        %v1459 = vadd.f32 %v1457, 1e-05
        %v1460 = vrsqrt.pop %v1458
        %v1461 = vrsqrt.pop %v1459
        %v1462 = vmul.f32 %v1446, %v1460
        %v1463 = vmul.f32 %v1447, %v1461
        %v1464 = vlaneseq
        %v1465 = vshrl.u32 %v1464, 7
        %v1466 = vsub.s32 0, %v1465
        %v1467 = vrot.slane %v456, %v1466
        %v1468 = vmul.f32 %v1462, %v1467
        %v1469 = vmul.f32 %v1463, %v1467
        %v1470 = vlaneseq
        %v1471 = vshrl.u32 %v1470, 7
        %v1472 = vsub.s32 0, %v1471
        %v1473 = vrot.slane %v457, %v1472
        %v1474 = vadd.f32 %v1468, %v1473
        %v1475 = vadd.f32 %v1469, %v1473
        %v1476 = vsel %vm1436, %v1474, 0.0
        %v1477 = vrot.slane %v1476, 4
        %v1478 = vadd.f32 %v1476, %v1477
        %v1479 = vrot.slane %v1478, 2
        %v1480 = vadd.f32 %v1478, %v1479
        %v1481 = vrot.slane %v1480, 1
        %v1482 = vadd.f32 %v1480, %v1481
        %v1483 = vsel %vm1436, %v1475, 0.0
        %v1484 = vrot.slane %v1483, 4
        %v1485 = vadd.f32 %v1483, %v1484
        %v1486 = vrot.slane %v1485, 2
        %v1487 = vadd.f32 %v1485, %v1486
        %v1488 = vrot.slane %v1487, 1
        %v1489 = vadd.f32 %v1487, %v1488
        %v1490 = vrcp.pop 8.0
        %v1491 = vmul.f32 %v1482, %v1490
        %v1492 = vmul.f32 %v1489, %v1490
        %v1493 = vpack.c.bf16 %v1475, %v1474
        %v1494 = vlaneseq
        %v1495 = vshrl.u32 %v1494, 7
        %v1496 = vsub.s32 0, %v1495
        %v1497 = vrot.slane %v461, %v1496
        %v1510 = vunpack.c.l.b16 %v420
        %v1511 = vunpack.c.l.b16 %v421
        %v1512 = vunpack.c.l.b16 %v422
        %v1513 = vunpack.c.l.b16 %v423
        %v1514 = vunpack.c.l.b16 %v424
        %v1515 = vunpack.c.l.b16 %v425
        %v1516 = vunpack.c.l.b16 %v426
        %v1517 = vunpack.c.l.b16 %v427
        %v1518 = vunpack.c.l.b16 %v428
        %v1519 = vunpack.c.l.b16 %v429
        %v1520 = vunpack.c.l.b16 %v430
        %v1521 = vunpack.c.l.b16 %v431
        %v1522 = vpack.c.b16 %v1511, %v1510
        %v1523 = vpack.c.b16 %v1513, %v1512
        %v1524 = vpack.c.b16 %v1515, %v1514
        %v1525 = vpack.c.b16 %v1517, %v1516
        %v1526 = vpack.c.b16 %v1519, %v1518
        %v1527 = vpack.c.b16 %v1521, %v1520
        %v1535 = vsel %vm1436, %v1493, 0
        %1537 = vmatprep.subr.bf16.mxu0 0
        %1538 = vmatpush1.bf16.msra.mxu0 0
        %1539 = vmatprep.subr.bf16.mxu0 0
        %1540 = vmatpush1.bf16.msra.mxu0 0
        %1541 = vmatprep.subr.bf16.mxu0 0
        %1542 = vmatpush1.bf16.msra.mxu0 %v1527
        %1543 = vmatprep.subr.bf16.mxu0 0
        %1544 = vmatpush1.bf16.msra.mxu0 %v1526
        %1545 = vmatprep.subr.bf16.mxu0 0
        %1546 = vmatpush1.bf16.msra.mxu0 %v1525
        %1547 = vmatprep.subr.bf16.mxu0 0
        %1548 = vmatpush1.bf16.msra.mxu0 %v1524
        %1549 = vmatprep.subr.bf16.mxu0 0
        %1550 = vmatpush1.bf16.msra.mxu0 %v1523
        %1551 = vmatprep.subr.bf16.mxu0 0
        %1552 = vmatpush1.bf16.msra.mxu0 %v1522
        %1553 = vmatprep.subr.bf16.mxu0 0
        %1554 = vmatpush2.bf16.msra.mxu0 0
        %1555 = vmatprep.subr.bf16.mxu0 0
        %1556 = vmatpush2.bf16.msra.mxu0 0
        %1557 = vmatprep.subr.bf16.mxu0 0
        %1558 = vmatpush2.bf16.msra.mxu0 0
        %1559 = vmatprep.subr.bf16.mxu0 0
        %1560 = vmatpush2.bf16.msra.mxu0 0
        %1561 = vmatprep.subr.bf16.mxu0 0
        %1562 = vmatpush2.bf16.msra.mxu0 0
        %1563 = vmatprep.subr.bf16.mxu0 0
        %1564 = vmatpush2.bf16.msra.mxu0 0
        %1565 = vmatprep.subr.bf16.mxu0 0
        %1566 = vmatpush2.bf16.msra.mxu0 0
        %1567 = vmatprep.subr.bf16.mxu0 0
        %1568 = vmatpush2.bf16.msra.mxu0 0
        %1569 = vmatprep.mubr.bf16.mxu0 0
        %1570 = vmatmul.mubr.bf16.gmra.mxu0 %v1535
        %v1571 = vpop.f32.mrf.mxu0
        %v1572 = vadd.f32 %v1497, %v1571
        %v1573 = vpop.f32.mrf.mxu0
        %v1574 = vpop.f32.mrf.mxu0
        %v1575 = vadd.f32 %v1497, %v1574
        %v1576 = vpop.f32.mrf.mxu0
        %1577 = vdwg.mxu0
        %v1578 = vpack.c.bf16 %v1491, %v1491
        %v1579 = vpack.c.bf16 %v1492, %v1492
        %v1582 = vunpack.c.l.b16 %v1578
        %v1583 = vunpack.c.l.b16 %v1579
        %v1584 = vsel %vm1141, %v1583, %v1582
        %v1585 = vpack.c.b16 %v1584, %v1584
        %v1598 = vunpack.c.l.b16 %v432
        %v1599 = vunpack.c.l.b16 %v433
        %v1600 = vunpack.c.l.b16 %v434
        %v1601 = vunpack.c.l.b16 %v435
        %v1602 = vunpack.c.l.b16 %v436
        %v1603 = vunpack.c.l.b16 %v437
        %v1604 = vunpack.c.l.b16 %v438
        %v1605 = vunpack.c.l.b16 %v439
        %v1606 = vunpack.c.l.b16 %v440
        %v1607 = vunpack.c.l.b16 %v441
        %v1608 = vunpack.c.l.b16 %v442
        %v1609 = vunpack.c.l.b16 %v443
        %v1610 = vpack.c.b16 %v1599, %v1598
        %v1611 = vpack.c.b16 %v1601, %v1600
        %v1612 = vpack.c.b16 %v1603, %v1602
        %v1613 = vpack.c.b16 %v1605, %v1604
        %v1614 = vpack.c.b16 %v1607, %v1606
        %v1615 = vpack.c.b16 %v1609, %v1608
        %v1623 = vsel %vm1436, %v1585, 0
        %1625 = vmatprep.subr.bf16.mxu0 0
        %1626 = vmatpush1.bf16.msra.mxu0 0
        %1627 = vmatprep.subr.bf16.mxu0 0
        %1628 = vmatpush1.bf16.msra.mxu0 0
        %1629 = vmatprep.subr.bf16.mxu0 0
        %1630 = vmatpush1.bf16.msra.mxu0 %v1615
        %1631 = vmatprep.subr.bf16.mxu0 0
        %1632 = vmatpush1.bf16.msra.mxu0 %v1614
        %1633 = vmatprep.subr.bf16.mxu0 0
        %1634 = vmatpush1.bf16.msra.mxu0 %v1613
        %1635 = vmatprep.subr.bf16.mxu0 0
        %1636 = vmatpush1.bf16.msra.mxu0 %v1612
        %1637 = vmatprep.subr.bf16.mxu0 0
        %1638 = vmatpush1.bf16.msra.mxu0 %v1611
        %1639 = vmatprep.subr.bf16.mxu0 0
        %1640 = vmatpush1.bf16.msra.mxu0 %v1610
        %1641 = vmatprep.subr.bf16.mxu0 0
        %1642 = vmatpush2.bf16.msra.mxu0 0
        %1643 = vmatprep.subr.bf16.mxu0 0
        %1644 = vmatpush2.bf16.msra.mxu0 0
        %1645 = vmatprep.subr.bf16.mxu0 0
        %1646 = vmatpush2.bf16.msra.mxu0 0
        %1647 = vmatprep.subr.bf16.mxu0 0
        %1648 = vmatpush2.bf16.msra.mxu0 0
        %1649 = vmatprep.subr.bf16.mxu0 0
        %1650 = vmatpush2.bf16.msra.mxu0 0
        %1651 = vmatprep.subr.bf16.mxu0 0
        %1652 = vmatpush2.bf16.msra.mxu0 0
        %1653 = vmatprep.subr.bf16.mxu0 0
        %1654 = vmatpush2.bf16.msra.mxu0 0
        %1655 = vmatprep.subr.bf16.mxu0 0
        %1656 = vmatpush2.bf16.msra.mxu0 0
        %1657 = vmatprep.mubr.bf16.mxu0 0
        %1658 = vmatmul.mubr.bf16.gmra.mxu0 %v1623
        %v1659 = vpop.f32.mrf.mxu0
        %v1660 = vadd.f32 0.0, %v1659
        %v1661 = vpop.f32.mrf.mxu0
        %v1662 = vpop.f32.mrf.mxu0
        %v1663 = vpop.f32.mrf.mxu0
        %1664 = vdwg.mxu0
        %v1667 = vunpack.c.l.s4 1966171168
        %v1668 = vunpack.c.0.s8 %v1667
        %v1669 = vlaneseq
        %v1670 = vshrl.u32 %v1669, 7
        %v1671 = vsub.s32 %v1668, %v1670
        %v1672 = vrot.slane %v1660, %v1671
        %v1673 = vcombine.high %v1672, %v1672
        %v1675 = vunpack.c.l.s4 1966171168
        %v1676 = vunpack.c.0.s8 %v1675
        %v1677 = vlaneseq
        %v1678 = vshrl.u32 %v1677, 7
        %v1679 = vsub.s32 %v1676, %v1678
        %v1680 = vrot.slane %v1672, %v1679
        %v1682 = vunpack.c.l.s4 1966171168
        %v1683 = vunpack.c.0.s8 %v1682
        %v1684 = vlaneseq
        %v1685 = vshrl.u32 %v1684, 7
        %v1686 = vsub.s32 %v1683, %v1685
        %v1687 = vrot.slane %v1673, %v1686
        %v1688 = vlaneseq
        %v1689 = vshrl.u32 %v1688, 7
        %v1690 = vsub.s32 0, %v1689
        %v1691 = vrot.slane %v1680, %v1690
        %v1692 = vlaneseq
        %v1693 = vshrl.u32 %v1692, 7
        %v1694 = vsub.s32 0, %v1693
        %v1695 = vrot.slane %v1687, %v1694
        %v1698 = vsub.f32 %v1572, %v1691
        %v1699 = vsub.f32 %v1575, %v1695
        %v1700 = vmax.f32 %v1698, 0.0
        %v1701 = vmax.f32 %v1699, 0.0
        %v1702 = vsel %vm490, %v1700, 0.0
        %v1703 = vrot.slane %v1702, 4
        %v1704 = vadd.f32 %v1702, %v1703
        %v1705 = vrot.slane %v1704, 2
        %v1706 = vadd.f32 %v1704, %v1705
        %v1707 = vrot.slane %v1706, 1
        %v1708 = vadd.f32 %v1706, %v1707
        %v1709 = vsel %vm490, %v1701, 0.0
        %v1710 = vrot.slane %v1709, 4
        %v1711 = vadd.f32 %v1709, %v1710
        %v1712 = vrot.slane %v1711, 2
        %v1713 = vadd.f32 %v1711, %v1712
        %v1714 = vrot.slane %v1713, 1
        %v1715 = vadd.f32 %v1713, %v1714
        %v1716 = vmul.f32 %v1708, %v1490
        %v1717 = vmul.f32 %v1715, %v1490
        %v1718 = vpack.c.bf16 %v1701, %v1700
        %v1719 = vlaneseq
        %v1720 = vshrl.u32 %v1719, 7
        %v1721 = vsub.s32 0, %v1720
        %v1722 = vrot.slane %v462, %v1721
        %v1727 = vunpack.c.l.b16 %v448
        %v1728 = vunpack.c.l.b16 %v449
        %v1729 = vunpack.c.l.b16 %v450
        %v1730 = vunpack.c.l.b16 %v451
        %v1731 = vpack.c.b16 %v1728, %v1727
        %v1732 = vpack.c.b16 %v1730, %v1729
        %v1736 = vsel %vm490, %v1718, 0
        %1738 = vmatprep.subr.bf16.mxu0 0
        %1739 = vmatpush1.bf16.msra.mxu0 0
        %1740 = vmatprep.subr.bf16.mxu0 0
        %1741 = vmatpush1.bf16.msra.mxu0 0
        %1742 = vmatprep.subr.bf16.mxu0 0
        %1743 = vmatpush1.bf16.msra.mxu0 0
        %1744 = vmatprep.subr.bf16.mxu0 0
        %1745 = vmatpush1.bf16.msra.mxu0 0
        %1746 = vmatprep.subr.bf16.mxu0 0
        %1747 = vmatpush1.bf16.msra.mxu0 0
        %1748 = vmatprep.subr.bf16.mxu0 0
        %1749 = vmatpush1.bf16.msra.mxu0 0
        %1750 = vmatprep.subr.bf16.mxu0 0
        %1751 = vmatpush1.bf16.msra.mxu0 %v1732
        %1752 = vmatprep.subr.bf16.mxu0 0
        %1753 = vmatpush1.bf16.msra.mxu0 %v1731
        %1754 = vmatprep.subr.bf16.mxu0 0
        %1755 = vmatpush2.bf16.msra.mxu0 0
        %1756 = vmatprep.subr.bf16.mxu0 0
        %1757 = vmatpush2.bf16.msra.mxu0 0
        %1758 = vmatprep.subr.bf16.mxu0 0
        %1759 = vmatpush2.bf16.msra.mxu0 0
        %1760 = vmatprep.subr.bf16.mxu0 0
        %1761 = vmatpush2.bf16.msra.mxu0 0
        %1762 = vmatprep.subr.bf16.mxu0 0
        %1763 = vmatpush2.bf16.msra.mxu0 0
        %1764 = vmatprep.subr.bf16.mxu0 0
        %1765 = vmatpush2.bf16.msra.mxu0 0
        %1766 = vmatprep.subr.bf16.mxu0 0
        %1767 = vmatpush2.bf16.msra.mxu0 0
        %1768 = vmatprep.subr.bf16.mxu0 0
        %1769 = vmatpush2.bf16.msra.mxu0 0
        %1770 = vmatprep.mubr.bf16.mxu0 0
        %1771 = vmatmul.mubr.bf16.gmra.mxu0 %v1736
        %v1772 = vpop.f32.mrf.mxu0
        %v1773 = vadd.f32 %v1722, %v1772
        %v1774 = vpop.f32.mrf.mxu0
        %v1775 = vpop.f32.mrf.mxu0
        %v1776 = vadd.f32 %v1722, %v1775
        %v1777 = vpop.f32.mrf.mxu0
        %1778 = vdwg.mxu0
        %v1779 = vpack.c.bf16 %v1716, %v1716
        %v1780 = vpack.c.bf16 %v1717, %v1717
        %v1783 = vunpack.c.l.b16 %v1779
        %v1784 = vunpack.c.l.b16 %v1780
        %v1785 = vsel %vm1141, %v1784, %v1783
        %v1786 = vpack.c.b16 %v1785, %v1785
        %v1791 = vunpack.c.l.b16 %v452
        %v1792 = vunpack.c.l.b16 %v453
        %v1793 = vunpack.c.l.b16 %v454
        %v1794 = vunpack.c.l.b16 %v455
        %v1795 = vpack.c.b16 %v1792, %v1791
        %v1796 = vpack.c.b16 %v1794, %v1793
        %v1800 = vsel %vm490, %v1786, 0
        %1802 = vmatprep.subr.bf16.mxu0 0
        %1803 = vmatpush1.bf16.msra.mxu0 0
        %1804 = vmatprep.subr.bf16.mxu0 0
        %1805 = vmatpush1.bf16.msra.mxu0 0
        %1806 = vmatprep.subr.bf16.mxu0 0
        %1807 = vmatpush1.bf16.msra.mxu0 0
        %1808 = vmatprep.subr.bf16.mxu0 0
        %1809 = vmatpush1.bf16.msra.mxu0 0
        %1810 = vmatprep.subr.bf16.mxu0 0
        %1811 = vmatpush1.bf16.msra.mxu0 0
        %1812 = vmatprep.subr.bf16.mxu0 0
        %1813 = vmatpush1.bf16.msra.mxu0 0
        %1814 = vmatprep.subr.bf16.mxu0 0
        %1815 = vmatpush1.bf16.msra.mxu0 %v1796
        %1816 = vmatprep.subr.bf16.mxu0 0
        %1817 = vmatpush1.bf16.msra.mxu0 %v1795
        %1818 = vmatprep.subr.bf16.mxu0 0
        %1819 = vmatpush2.bf16.msra.mxu0 0
        %1820 = vmatprep.subr.bf16.mxu0 0
        %1821 = vmatpush2.bf16.msra.mxu0 0
        %1822 = vmatprep.subr.bf16.mxu0 0
        %1823 = vmatpush2.bf16.msra.mxu0 0
        %1824 = vmatprep.subr.bf16.mxu0 0
        %1825 = vmatpush2.bf16.msra.mxu0 0
        %1826 = vmatprep.subr.bf16.mxu0 0
        %1827 = vmatpush2.bf16.msra.mxu0 0
        %1828 = vmatprep.subr.bf16.mxu0 0
        %1829 = vmatpush2.bf16.msra.mxu0 0
        %1830 = vmatprep.subr.bf16.mxu0 0
        %1831 = vmatpush2.bf16.msra.mxu0 0
        %1832 = vmatprep.subr.bf16.mxu0 0
        %1833 = vmatpush2.bf16.msra.mxu0 0
        %1834 = vmatprep.mubr.bf16.mxu0 0
        %1835 = vmatmul.mubr.bf16.gmra.mxu0 %v1800
        %v1836 = vpop.f32.mrf.mxu0
        %v1837 = vadd.f32 0.0, %v1836
        %v1838 = vpop.f32.mrf.mxu0
        %v1839 = vpop.f32.mrf.mxu0
        %v1840 = vpop.f32.mrf.mxu0
        %1841 = vdwg.mxu0
        %v1844 = vunpack.c.l.s4 1966171168
        %v1845 = vunpack.c.0.s8 %v1844
        %v1846 = vlaneseq
        %v1847 = vshrl.u32 %v1846, 7
        %v1848 = vsub.s32 %v1845, %v1847
        %v1849 = vrot.slane %v1837, %v1848
        %v1850 = vcombine.high %v1849, %v1849
        %v1852 = vunpack.c.l.s4 1966171168
        %v1853 = vunpack.c.0.s8 %v1852
        %v1854 = vlaneseq
        %v1855 = vshrl.u32 %v1854, 7
        %v1856 = vsub.s32 %v1853, %v1855
        %v1857 = vrot.slane %v1849, %v1856
        %v1859 = vunpack.c.l.s4 1966171168
        %v1860 = vunpack.c.0.s8 %v1859
        %v1861 = vlaneseq
        %v1862 = vshrl.u32 %v1861, 7
        %v1863 = vsub.s32 %v1860, %v1862
        %v1864 = vrot.slane %v1850, %v1863
        %v1865 = vlaneseq
        %v1866 = vshrl.u32 %v1865, 7
        %v1867 = vsub.s32 0, %v1866
        %v1868 = vrot.slane %v1857, %v1867
        %v1869 = vlaneseq
        %v1870 = vshrl.u32 %v1869, 7
        %v1871 = vsub.s32 0, %v1870
        %v1872 = vrot.slane %v1864, %v1871
        %v1875 = vsub.f32 %v1773, %v1868
        %v1876 = vsub.f32 %v1776, %v1872
        %v1877 = vadd.f32 %v467, %v1875
        %v1878 = vadd.f32 %v468, %v1876
        %v1879 = vsel %vm490, %v1877, 0.0
        %1880 = vadd.xlane.f32.xlu0 %v1879
        %v1881 = vpop.xlane.xlu0 %1880
        %v1882 = vsel %vm490, %v1878, 0.0
        %1883 = vadd.xlane.f32.xlu0 %v1882
        %v1884 = vpop.xlane.xlu0 %1883
        %v1885 = vrcp.pop 32.0
        %v1886 = vmul.f32 %v1881, %v1885
        %v1887 = vmul.f32 %v1884, %v1885
        %v1888 = vsub.f32 %v1877, %v1886
        %v1889 = vsub.f32 %v1878, %v1887
        %v1890 = vmul.f32 %v1888, %v1888
        %v1891 = vmul.f32 %v1889, %v1889
        %v1892 = vsel %vm490, %v1890, 0.0
        %1893 = vadd.xlane.f32.xlu0 %v1892
        %v1894 = vpop.xlane.xlu0 %1893
        %v1895 = vsel %vm490, %v1891, 0.0
        %1896 = vadd.xlane.f32.xlu0 %v1895
        %v1897 = vpop.xlane.xlu0 %1896
        %v1898 = vmul.f32 %v1894, %v1885
        %v1899 = vmul.f32 %v1897, %v1885
        %v1900 = vadd.f32 %v1898, 1e-05
        %v1901 = vadd.f32 %v1899, 1e-05
        %v1902 = vrsqrt.pop %v1900
        %v1903 = vrsqrt.pop %v1901
        %v1904 = vmul.f32 %v1888, %v1902
        %v1905 = vmul.f32 %v1889, %v1903
        %v1906 = vlaneseq
        %v1907 = vshrl.u32 %v1906, 7
        %v1908 = vsub.s32 0, %v1907
        %v1909 = vrot.slane %v463, %v1908
        %v1910 = vmul.f32 %v1904, %v1909
        %v1911 = vmul.f32 %v1905, %v1909
        %v1912 = vlaneseq
        %v1913 = vshrl.u32 %v1912, 7
        %v1914 = vsub.s32 0, %v1913
        %v1915 = vrot.slane %v464, %v1914
        %v1916 = vadd.f32 %v1910, %v1915
        %v1917 = vadd.f32 %v1911, %v1915
        %1918 = vst.msk [vmem:[#allocation2] sm:$0xff] %vm490, %v1916
        %1919 = vst.msk [vmem:[#allocation2 + $0x8] sm:$0xff] %vm490, %v1917
        %1920 = vst.msk [vmem:[#allocation3] sm:$0xff] %vm1188, %v1154
        %1921 = vst.msk [vmem:[#allocation3 + $0x8] sm:$0xff] %vm1188, %v1308
        %v1922 = vsel %vm1188, %v1154, 0.0
        %v1923 = vsel %vm1188, %v1308, 0.0
        %1924 = vst [vmem:[%s241] sm:$0xff] %v1922
        %1925 = vst [vmem:[%s241 + $0x8] sm:$0xff] %v1923
        %p1926 = scmp.eq.s32.totalorder %s27, 2
        // Predicated region
        $region108: #{tpu_custom_call.1} parent=31 // pred_check
          %p1927 = pneg %p1926
        $region109: #{tpu_custom_call.1} parent=31 // pred_check_branch
          %1929 = sbr.rel (%p1927) target = $region111
        $region110: #{tpu_custom_call.1} parent=31 // pred_region
          %1930 = vst.msk [vmem:[#allocation9] sm:$0xff] %vm490, %v1916
          %1931 = vst.msk [vmem:[#allocation9 + $0x8] sm:$0xff] %vm490, %v1917
        $region111: #{tpu_custom_call.1} parent=31 // pred_fallthru
          _
        %s1932 = sand.u32 %s122, 1
        %s1933 = scalar_lea.sflag [#allocation8], %s1932
        %s1934 = sand.u32 %s122, 1
        %s1935 = smul.addr %s1934, 16
        %s1936 = scalar_lea.vmem [#allocation7], %s1935
        // Predicated region
        $region112: #{tpu_custom_call.1} parent=31 // pred_check
          %p1937 = pneg %p132
        $region113: #{tpu_custom_call.1} parent=31 // pred_check_branch
          %1939 = sbr.rel (%p1937) target = $region115
        $region114: #{tpu_custom_call.1} parent=31 // pred_region
          %s1940 = smul.u32 2, %s26
          %s1942 = ssub.s32 256, 256
          %1943 = vsyncadd %s1933, %s1942
          %s1944 = smul.addr %s27, 2
          %s1945 = sadd.s32 %s1940, %s1944
          %s1946 = smul.addr %s1945, 128
          %s1947 = scalar_lea.hbm %s5, %s1946
          %s1948 = sshll.u32 %s1936, 4
          %s1949 = int_to_ptr.vmem [resolvable:$true] %s1948
          %1954 = dma.vmem_to_hbm [thread:$0]  %s1949, 256, %s1947, %s1933, 128, 128, 8
        $region115: #{tpu_custom_call.1} parent=31 // pred_fallthru
          _
        // Predicated region
        $region116: #{tpu_custom_call.1} parent=31 // pred_check
          %p1955 = pneg %p158
        $region117: #{tpu_custom_call.1} parent=31 // pred_check_branch
          %1957 = sbr.rel (%p1955) target = $region119
        $region118: #{tpu_custom_call.1} parent=31 // pred_region
          %s1958 = smul.u32 2, %s26
          %s1960 = ssub.s32 256, 256
          %1961 = vsyncadd [#allocation10], %s1960
          %s1962 = smul.addr %s1958, 128
          %s1963 = scalar_lea.hbm %s6, %s1962
          %s1964 = sshll.u32 [#allocation9], 4
          %s1965 = int_to_ptr.vmem [resolvable:$true] %s1964
          %1970 = dma.vmem_to_hbm [thread:$0]  %s1965, 256, %s1963, [#allocation10], 128, 128, 8
        $region119: #{tpu_custom_call.1} parent=31 // pred_fallthru
          _
        // Predicated region
        $region120: #{tpu_custom_call.1} parent=31 // pred_check
          %p1971 = pneg %p158
        $region121: #{tpu_custom_call.1} parent=31 // pred_check_branch
          %1973 = sbr.rel (%p1971) target = $region123
        $region122: #{tpu_custom_call.1} parent=31 // pred_region
          %1974 = dma.done [#allocation10], 256
        $region123: #{tpu_custom_call.1} parent=31 // pred_fallthru
          _
      $region32: #{tpu_custom_call.1} parent=5 // pred_fallthru
        _
      %p1975 = scmp.le.s32.totalorder 2, %s17
      // Predicated region
      $region124: #{tpu_custom_call.1} parent=5 // pred_check
        %p1976 = pneg %p1975
      $region125: #{tpu_custom_call.1} parent=5 // pred_check_branch
        %1978 = sbr.rel (%p1976) target = $region127
      $region126: #{tpu_custom_call.1} parent=5 // pred_region
        %s1979 = ssub.s32 %s17, 2
        // Predicated region
        $region128: #{tpu_custom_call.1} parent=126 // pred_check
          %p1980 = pneg %p138
        $region129: #{tpu_custom_call.1} parent=126 // pred_check_branch
          %1982 = sbr.rel (%p1980) target = $region131
        $region130: #{tpu_custom_call.1} parent=126 // pred_region
          %s1983 = sand.u32 %s123, 1
          %s1984 = scalar_lea.sflag [#allocation8], %s1983
          %s1985 = sand.u32 %s123, 1
          %s1986 = smul.addr %s1985, 16
          %s1987 = scalar_lea.vmem [#allocation7], %s1986
          %1988 = dma.done %s1984, 256
        $region131: #{tpu_custom_call.1} parent=126 // pred_fallthru
          _
      $region127: #{tpu_custom_call.1} parent=5 // pred_fallthru
        _
    $region6: #{tpu_custom_call.1} parent=1 // loop_footer
      %s21 = sadd.s32 1, %s17
    $region7: #{tpu_custom_call.1} parent=1 // loop_footer_branch
      %16 = sbr.rel target = $region3
    $region8: #{tpu_custom_call.1} parent=1 // loop_exit
      _
    %1989 = vsyncpa [#allocation8], 1
    %s1990 = scalar_lea.sflag [#allocation8], 1
    %1991 = vsyncpa %s1990, 1
    %1992 = vsyncpa [#allocation10], 1
  %1993 = vsyncmov [#allocation6]
  %s1994 = vpop.sfrf %1993
  %p1995 = scmp.eq.s32.totalorder %s1994, 0
  %p1996 = pneg %p1995
  %1998 = shalt.err (%p1996)
  %s1999 = scalar_lea.sflag [#allocation6], 1
  %2000 = vsyncmov %s1999
  %s2001 = vpop.sfrf %2000
  %p2002 = scmp.eq.s32.totalorder %s2001, 0
  %p2003 = pneg %p2002
  %2005 = shalt.err (%p2003)

</llo_original>
